<compile_context>
chip_gen: v7x
topology: tpu7x:2x2x1
jax: 0.10.0
libtpu: 0.0.40
codegen_flags: <defaults>
</compile_context>

<pallas_src>
import jax
import jax.numpy as jnp
from jax.experimental import pallas as pl
from jax.experimental.pallas import tpu as pltpu


# Hamilton product table: out[c] = sum_p sign * (x[p] @ w[idx]).
# Component order: 0=r, 1=i, 2=j, 3=k.  Matches the torch.cat block layout of
# quaternion_linear():
#   out_r = xr@r - xi@i - xj@j - xk@k
#   out_i = xr@i + xi@r - xj@k + xk@j
#   out_j = xr@j + xi@k + xj@r - xk@i
#   out_k = xr@k - xi@j + xj@i + xk@r
_HAMILTON = (
    ((0, +1), (1, -1), (2, -1), (3, -1)),   # out_r
    ((1, +1), (0, +1), (3, -1), (2, +1)),   # out_i
    ((2, +1), (3, +1), (0, +1), (1, -1)),   # out_j
    ((3, +1), (2, -1), (1, +1), (0, +1)),   # out_k
)


def _qlinear_kernel(xr_ref, xi_ref, xj_ref, xk_ref,
                    wr_ref, wi_ref, wj_ref, wk_ref,
                    b_ref, o_ref, acc_ref):
    """One (tm, tn) output tile per quaternion component, accumulated over K.

    x*_ref : (tm, tk)      the four quaternion components of the input tile
    w*_ref : (tk, tn)      the four quaternion component weight tiles
    b_ref  : (4, tn)       bias (zeros when the layer has no bias), f32
    o_ref  : (4, tm, tn)   output tile
    acc_ref: (4, tm, tn)   f32 accumulator scratch (resident across K steps)
    """
    k = pl.program_id(2)

    @pl.when(k == 0)
    def _init():
        # Bias is folded into the accumulator init -> added exactly once.
        acc_ref[...] = jnp.broadcast_to(b_ref[...][:, None, :], acc_ref.shape)

    # Hoist the VMEM->vreg loads out of the 16-matmul loop (trace-time).
    xv = (xr_ref[...], xi_ref[...], xj_ref[...], xk_ref[...])
    wv = (wr_ref[...], wi_ref[...], wj_ref[...], wk_ref[...])

    # 16 MXU matmuls; signs folded at trace time into add/sub on the f32 acc.
    for c in range(4):
        acc = acc_ref[c]
        for p, (w_idx, sign) in enumerate(_HAMILTON[c]):
            d = jnp.dot(xv[p], wv[w_idx], preferred_element_type=jnp.float32)
            acc = acc + d if sign > 0 else acc - d
        acc_ref[c] = acc

    @pl.when(k == pl.num_programs(2) - 1)
    def _finalize():
        o_ref[...] = acc_ref[...].astype(o_ref.dtype)


def build_hamilton_weight(r, i, j, k):
    """Reference-only helper: the full block weight matrix built exactly like
    quaternion_linear() does with torch.cat (used for the correctness check)."""
    col_r = jnp.concatenate([r, -i, -j, -k], axis=0)
    col_i = jnp.concatenate([i,  r, -k,  j], axis=0)
    col_j = jnp.concatenate([j,  k,  r, -i], axis=0)
    col_k = jnp.concatenate([k, -j,  i,  r], axis=0)
    return jnp.concatenate([col_r, col_i, col_j, col_k], axis=1)


def _round_up(x, m):
    return ((x + m - 1) // m) * m


def _vmem_footprint(tm, tn, tk, itemsize):
    x_b = 4 * tm * tk * itemsize        # four x component blocks
    w_b = 4 * tk * tn * itemsize        # four weight component blocks
    o_b = 4 * tm * tn * itemsize        # output block
    acc = 4 * tm * tn * 4               # f32 accumulator scratch
    bias = 4 * tn * 4
    # input/output blocks are double-buffered by the pipeline; acc is not.
    return 2 * (x_b + w_b + o_b + bias) + acc


def _pick_tiles(M, Nq, Kq, itemsize):
    """Per-generation tile targets, clamped to problem size and a VMEM budget."""
    kind = ""
    try:
        kind = jax.devices()[0].device_kind.lower()
    except Exception:
        pass
    if ("v5 lite" in kind) or ("v5e" in kind) or ("v5lite" in kind):
        # v5e: 4x128^2 MXU -> 128-aligned tiles; 128 MiB VMEM.
        tm_t, tn_t, tk_t, budget = 256, 128, 256, 24 * 2**20
    elif "v7" in kind:
        # v7x: 64 MiB VMEM per TC -> tighter budget; large K tiles keep MXU fed.
        tm_t, tn_t, tk_t, budget = 256, 256, 512, 16 * 2**20
    else:
        # v6e (default): 2x256^2 MXU -> 256-aligned N/K tiles; 128 MiB VMEM.
        tm_t, tn_t, tk_t, budget = 512, 256, 512, 24 * 2**20

    tm = min(tm_t, _round_up(M, 8))
    tn = min(tn_t, _round_up(Nq, 128))
    tk = min(tk_t, _round_up(Kq, 128))

    while _vmem_footprint(tm, tn, tk, itemsize) > budget:
        if tk > 128 and tk >= max(tm, tn):
            tk = max(128, _round_up(tk // 2, 128))
        elif tm > 8 and tm >= tn:
            tm = max(8, _round_up(tm // 2, 8))
        elif tn > 128:
            tn = max(128, _round_up(tn // 2, 128))
        elif tm > 8:
            tm = max(8, _round_up(tm // 2, 8))
        elif tk > 128:
            tk = max(128, _round_up(tk // 2, 128))
        else:
            break
    return tm, tn, tk


def _pad2(a, rows, cols):
    r, c = a.shape
    if rows == r and cols == c:
        return a
    return jnp.pad(a, ((0, rows - r), (0, cols - c)))


def qlinear_autograd_forward(x, r_weight, i_weight, j_weight, k_weight,
                             bias=None, *, compute_dtype=None, tiles=None):
    """Forward of QLinearAutograd (rotation=False): x @ W_hamilton + bias.

    x: (..., 4 * in_q); r/i/j/k_weight: (in_q, out_q); bias: (4 * out_q,) | None.
    compute_dtype: optional matmul dtype (e.g. jnp.bfloat16); accumulation is f32.
    tiles: optional (tm, tn, tk) override (tm % 8 == 0, tn/tk % 128 == 0).
    """
    in_q, out_q = r_weight.shape
    k_full = 4 * in_q
    n_full = 4 * out_q
    assert x.shape[-1] == k_full, "last dim of x must be 4 * in_q"
    lead_shape = x.shape[:-1]

    out_dtype = x.dtype
    if compute_dtype is None:
        compute_dtype = x.dtype
    itemsize = jnp.dtype(compute_dtype).itemsize

    # Flatten leading dims; x columns are laid out as [x_r | x_i | x_j | x_k].
    x2 = x.reshape(-1, 4, in_q).astype(compute_dtype)
    M = x2.shape[0]

    if tiles is None:
        tm, tn, tk = _pick_tiles(M, out_q, in_q, itemsize)
    else:
        tm, tn, tk = tiles

    mp = _round_up(M, tm)
    np_ = _round_up(out_q, tn)      # lane-dense output (multiple of 128)
    kp = _round_up(in_q, tk)
    kqt = kp // tk                  # K tiles per quaternion component

    # Pad per-component so each component's column block is tk-aligned.  When
    # no padding is needed these reshapes are free views (no HBM copy).
    if mp != M or kp != in_q:
        x2 = jnp.pad(x2, ((0, mp - M), (0, 0), (0, kp - in_q)))
    xf = x2.reshape(mp, 4 * kp)

    ws = [_pad2(w.astype(compute_dtype), kp, np_)
          for w in (r_weight, i_weight, j_weight, k_weight)]

    if bias is None:
        b = jnp.zeros((4, np_), jnp.float32)
    else:
        b = _pad2(bias.reshape(4, out_q).astype(jnp.float32), 4, np_)

    grid = (mp // tm, np_ // tn, kqt)

    # Four BlockSpecs on the same x array: component c lives at column-block
    # offset c * kqt, so no wrapper-side transpose / re-layout of x is needed.
    x_specs = [
        pl.BlockSpec((tm, tk), (lambda i, j, k, c=c: (i, c * kqt + k)))
        for c in range(4)
    ]
    w_specs = [pl.BlockSpec((tk, tn), lambda i, j, k: (k, j)) for _ in range(4)]
    b_spec = pl.BlockSpec((4, tn), lambda i, j, k: (0, j))

    flops = 16 * 2 * mp * kp * np_
    bytes_accessed = (itemsize * (4 * mp * kp * (np_ // tn)
                                  + 4 * kp * np_ * (mp // tm))
                      + jnp.dtype(out_dtype).itemsize * 4 * mp * np_)
    vmem_limit = int(min(64 * 2**20,
                         max(16 * 2**20,
                             2 * _vmem_footprint(tm, tn, tk, itemsize))))

    out = pl.pallas_call(
        _qlinear_kernel,
        out_shape=jax.ShapeDtypeStruct((4, mp, np_), out_dtype),
        grid_spec=pltpu.PrefetchScalarGridSpec(
            num_scalar_prefetch=0,
            grid=grid,
            in_specs=x_specs + w_specs + [b_spec],
            out_specs=pl.BlockSpec((4, tm, tn), lambda i, j, k: (0, i, j)),
            scratch_shapes=[pltpu.VMEM((4, tm, tn), jnp.float32)],
        ),
        compiler_params=pltpu.CompilerParams(
            dimension_semantics=("parallel", "parallel", "arbitrary"),
            vmem_limit_bytes=vmem_limit,
        ),
        cost_estimate=pl.CostEstimate(
            flops=flops, transcendentals=0, bytes_accessed=bytes_accessed),
    )(xf, xf, xf, xf, *ws, b)

    out = out[:, :M, :out_q]                                 # (4, M, out_q)
    out = jnp.transpose(out, (1, 0, 2)).reshape(M, n_full)   # (M, 4*out_q)
    return out.reshape(*lead_shape, n_full)


if __name__ == "__main__":
    key = jax.random.PRNGKey(0)
    k_t1, k_t2 = jax.random.split(key, 2)

    # ---- Test 1: small layer with bias (single-tile grid, output padded to
    # 128 lanes inside the kernel and sliced back in the wrapper).
    in_features, out_features, batch = 32, 32, 8
    in_q, out_q = in_features // 4, out_features // 4
    kx, kr, ki, kj, kk = jax.random.split(k_t1, 5)
    # TODO(synk): true quaternion_init (polar magnitude/phase scheme) from
    # affect_init is not reproduced; a deterministic normal init of identical
    # shapes is used instead.
    scale = 1.0 / jnp.sqrt(jnp.float32(in_q + out_q))
    r_w = jax.random.normal(kr, (in_q, out_q), jnp.float32) * scale
    i_w = jax.random.normal(ki, (in_q, out_q), jnp.float32) * scale
    j_w = jax.random.normal(kj, (in_q, out_q), jnp.float32) * scale
    k_w = jax.random.normal(kk, (in_q, out_q), jnp.float32) * scale
    bias = jnp.zeros((out_features,), jnp.float32)   # reset_parameters: bias = 0
    x = jax.random.normal(kx, (batch, in_features), jnp.float32)

    out = jax.block_until_ready(
        qlinear_autograd_forward(x, r_w, i_w, j_w, k_w, bias))
    ref = x @ build_hamilton_weight(r_w, i_w, j_w, k_w) + bias
    assert out.shape == (batch, out_features)
    assert jnp.allclose(out, ref, atol=1e-4, rtol=1e-4), "test-1 mismatch"

    # ---- Test 2: multi-tile grid (2 x 2 x 2) with explicit small tiles,
    # no bias, multi-dim leading shape; exercises the K-accumulation path,
    # the component-offset x BlockSpecs, pl.when init/finalize and padding.
    in_features2, out_features2 = 1024, 1024
    in_q2, out_q2 = in_features2 // 4, out_features2 // 4
    kx2, kr2, ki2, kj2, kk2 = jax.random.split(k_t2, 5)
    scale2 = 1.0 / jnp.sqrt(jnp.float32(in_q2 + out_q2))
    r2 = jax.random.normal(kr2, (in_q2, out_q2), jnp.float32) * scale2
    i2 = jax.random.normal(ki2, (in_q2, out_q2), jnp.float32) * scale2
    j2 = jax.random.normal(kj2, (in_q2, out_q2), jnp.float32) * scale2
    kk2_w = jax.random.normal(kk2, (in_q2, out_q2), jnp.float32) * scale2
    x2 = jax.random.normal(kx2, (2, 8, in_features2), jnp.float32)

    out2 = jax.block_until_ready(
        qlinear_autograd_forward(x2, r2, i2, j2, kk2_w, None,
                                 tiles=(8, 128, 128)))
    ref2 = (x2.reshape(-1, in_features2)
            @ build_hamilton_weight(r2, i2, j2, kk2_w)).reshape(2, 8, out_features2)
    assert out2.shape == (2, 8, out_features2)
    assert jnp.allclose(out2, ref2, atol=1e-3, rtol=1e-3), "test-2 mismatch"

    print("KERNEL_OK")
</pallas_src>

<mosaic_0001>
module attributes {stable_mosaic.version = 11 : i64} {
  func.func @_qlinear_kernel(%arg0: i32, %arg1: i32, %arg2: i32, %arg3: memref<8x128xf32, #tpu.memory_space<vmem>>, %arg4: memref<8x128xf32, #tpu.memory_space<vmem>>, %arg5: memref<8x128xf32, #tpu.memory_space<vmem>>, %arg6: memref<8x128xf32, #tpu.memory_space<vmem>>, %arg7: memref<128x128xf32, #tpu.memory_space<vmem>>, %arg8: memref<128x128xf32, #tpu.memory_space<vmem>>, %arg9: memref<128x128xf32, #tpu.memory_space<vmem>>, %arg10: memref<128x128xf32, #tpu.memory_space<vmem>>, %arg11: memref<4x128xf32, #tpu.memory_space<vmem>>, %arg12: memref<4x8x128xf32, #tpu.memory_space<vmem>>, %arg13: memref<4x8x128xf32, #tpu.memory_space<vmem>>) attributes {dimension_semantics = [#tpu.dimension_semantics<parallel>, #tpu.dimension_semantics<parallel>, #tpu.dimension_semantics<arbitrary>], iteration_bounds = array<i64: 1, 1, 1>, scalar_prefetch = 0 : i64, scratch_operands = 1 : i64, tpu.core_type = #tpu.core_type<tc>, window_params = [{transform_indices = @transform_0, window_bounds = array<i64: 8, 128>}, {transform_indices = @transform_1, window_bounds = array<i64: 8, 128>}, {transform_indices = @transform_2, window_bounds = array<i64: 8, 128>}, {transform_indices = @transform_3, window_bounds = array<i64: 8, 128>}, {transform_indices = @transform_4, window_bounds = array<i64: 128, 128>}, {transform_indices = @transform_5, window_bounds = array<i64: 128, 128>}, {transform_indices = @transform_6, window_bounds = array<i64: 128, 128>}, {transform_indices = @transform_7, window_bounds = array<i64: 128, 128>}, {transform_indices = @transform_8, window_bounds = array<i64: 4, 128>}, {transform_indices = @transform_9, window_bounds = array<i64: 4, 8, 128>}]} {
    %c0_i32 = arith.constant 0 : i32
    %0 = arith.cmpi eq, %arg2, %c0_i32 : i32
    %1 = arith.extui %0 : i1 to i32
    %c0_i32_0 = arith.constant 0 : i32
    %2 = arith.cmpi ne, %1, %c0_i32_0 : i32
    scf.if %2 {
      %c0_54 = arith.constant 0 : index
      %c0_55 = arith.constant 0 : index
      %66 = vector.load %arg11[%c0_54, %c0_55] : memref<4x128xf32, #tpu.memory_space<vmem>>, vector<4x128xf32>
      %67 = vector.shape_cast %66 : vector<4x128xf32> to vector<4x1x128xf32>
      %68 = vector.shape_cast %67 : vector<4x1x128xf32> to vector<4x1x128xf32>
      %69 = vector.broadcast %68 : vector<4x1x128xf32> to vector<4x8x128xf32>
      %c0_56 = arith.constant 0 : index
      %c0_57 = arith.constant 0 : index
      %c0_58 = arith.constant 0 : index
      %70 = vector.load %arg13[%c0_56, %c0_57, %c0_58] : memref<4x8x128xf32, #tpu.memory_space<vmem>>, vector<4x8x128xf32>
      tpu.vector_store %arg13[%c0_56, %c0_57, %c0_58], %69 {strides = array<i32>} : memref<4x8x128xf32, #tpu.memory_space<vmem>>, vector<4x8x128xf32>,
    } else {
    }
    %c0 = arith.constant 0 : index
    %c0_1 = arith.constant 0 : index
    %3 = vector.load %arg3[%c0, %c0_1] : memref<8x128xf32, #tpu.memory_space<vmem>>, vector<8x128xf32>
    %c0_2 = arith.constant 0 : index
    %c0_3 = arith.constant 0 : index
    %4 = vector.load %arg4[%c0_2, %c0_3] : memref<8x128xf32, #tpu.memory_space<vmem>>, vector<8x128xf32>
    %c0_4 = arith.constant 0 : index
    %c0_5 = arith.constant 0 : index
    %5 = vector.load %arg5[%c0_4, %c0_5] : memref<8x128xf32, #tpu.memory_space<vmem>>, vector<8x128xf32>
    %c0_6 = arith.constant 0 : index
    %c0_7 = arith.constant 0 : index
    %6 = vector.load %arg6[%c0_6, %c0_7] : memref<8x128xf32, #tpu.memory_space<vmem>>, vector<8x128xf32>
    %c0_8 = arith.constant 0 : index
    %c0_9 = arith.constant 0 : index
    %7 = vector.load %arg7[%c0_8, %c0_9] : memref<128x128xf32, #tpu.memory_space<vmem>>, vector<128x128xf32>
    %c0_10 = arith.constant 0 : index
    %c0_11 = arith.constant 0 : index
    %8 = vector.load %arg8[%c0_10, %c0_11] : memref<128x128xf32, #tpu.memory_space<vmem>>, vector<128x128xf32>
    %c0_12 = arith.constant 0 : index
    %c0_13 = arith.constant 0 : index
    %9 = vector.load %arg9[%c0_12, %c0_13] : memref<128x128xf32, #tpu.memory_space<vmem>>, vector<128x128xf32>
    %c0_14 = arith.constant 0 : index
    %c0_15 = arith.constant 0 : index
    %10 = vector.load %arg10[%c0_14, %c0_15] : memref<128x128xf32, #tpu.memory_space<vmem>>, vector<128x128xf32>
    %c0_16 = arith.constant 0 : index
    %c0_17 = arith.constant 0 : index
    %c0_18 = arith.constant 0 : index
    %11 = vector.load %arg13[%c0_16, %c0_17, %c0_18] : memref<4x8x128xf32, #tpu.memory_space<vmem>>, vector<1x8x128xf32>
    %12 = vector.shape_cast %11 : vector<1x8x128xf32> to vector<8x128xf32>
    %cst = arith.constant dense<0.000000e+00> : vector<8x128xf32>
    %13 = tpu.matmul %3, %7, %cst {dimension_numbers = #tpu.dot_dimension_numbers<[1], [0], [0], [1], [0, 0, 1, 1], [], []>} : vector<8x128xf32>, vector<128x128xf32>, vector<8x128xf32> -> vector<8x128xf32>
    %14 = arith.addf %12, %13 : vector<8x128xf32>
    %cst_19 = arith.constant dense<0.000000e+00> : vector<8x128xf32>
    %15 = tpu.matmul %4, %8, %cst_19 {dimension_numbers = #tpu.dot_dimension_numbers<[1], [0], [0], [1], [0, 0, 1, 1], [], []>} : vector<8x128xf32>, vector<128x128xf32>, vector<8x128xf32> -> vector<8x128xf32>
    %16 = arith.subf %14, %15 : vector<8x128xf32>
    %cst_20 = arith.constant dense<0.000000e+00> : vector<8x128xf32>
    %17 = tpu.matmul %5, %9, %cst_20 {dimension_numbers = #tpu.dot_dimension_numbers<[1], [0], [0], [1], [0, 0, 1, 1], [], []>} : vector<8x128xf32>, vector<128x128xf32>, vector<8x128xf32> -> vector<8x128xf32>
    %18 = arith.subf %16, %17 : vector<8x128xf32>
    %cst_21 = arith.constant dense<0.000000e+00> : vector<8x128xf32>
    %19 = tpu.matmul %6, %10, %cst_21 {dimension_numbers = #tpu.dot_dimension_numbers<[1], [0], [0], [1], [0, 0, 1, 1], [], []>} : vector<8x128xf32>, vector<128x128xf32>, vector<8x128xf32> -> vector<8x128xf32>
    %20 = arith.subf %18, %19 : vector<8x128xf32>
    %c0_22 = arith.constant 0 : index
    %c0_23 = arith.constant 0 : index
    %c0_24 = arith.constant 0 : index
    %21 = vector.load %arg13[%c0_22, %c0_23, %c0_24] : memref<4x8x128xf32, #tpu.memory_space<vmem>>, vector<1x8x128xf32>
    %22 = vector.shape_cast %21 : vector<1x8x128xf32> to vector<8x128xf32>
    %23 = vector.shape_cast %20 : vector<8x128xf32> to vector<1x8x128xf32>
    tpu.vector_store %arg13[%c0_22, %c0_23, %c0_24], %23 {strides = array<i32>} : memref<4x8x128xf32, #tpu.memory_space<vmem>>, vector<1x8x128xf32>,
    %c1 = arith.constant 1 : index
    %c0_25 = arith.constant 0 : index
    %c0_26 = arith.constant 0 : index
    %24 = vector.load %arg13[%c1, %c0_25, %c0_26] : memref<4x8x128xf32, #tpu.memory_space<vmem>>, vector<1x8x128xf32>
    %25 = vector.shape_cast %24 : vector<1x8x128xf32> to vector<8x128xf32>
    %cst_27 = arith.constant dense<0.000000e+00> : vector<8x128xf32>
    %26 = tpu.matmul %3, %8, %cst_27 {dimension_numbers = #tpu.dot_dimension_numbers<[1], [0], [0], [1], [0, 0, 1, 1], [], []>} : vector<8x128xf32>, vector<128x128xf32>, vector<8x128xf32> -> vector<8x128xf32>
    %27 = arith.addf %25, %26 : vector<8x128xf32>
    %cst_28 = arith.constant dense<0.000000e+00> : vector<8x128xf32>
    %28 = tpu.matmul %4, %7, %cst_28 {dimension_numbers = #tpu.dot_dimension_numbers<[1], [0], [0], [1], [0, 0, 1, 1], [], []>} : vector<8x128xf32>, vector<128x128xf32>, vector<8x128xf32> -> vector<8x128xf32>
    %29 = arith.addf %27, %28 : vector<8x128xf32>
    %cst_29 = arith.constant dense<0.000000e+00> : vector<8x128xf32>
    %30 = tpu.matmul %5, %10, %cst_29 {dimension_numbers = #tpu.dot_dimension_numbers<[1], [0], [0], [1], [0, 0, 1, 1], [], []>} : vector<8x128xf32>, vector<128x128xf32>, vector<8x128xf32> -> vector<8x128xf32>
    %31 = arith.subf %29, %30 : vector<8x128xf32>
    %cst_30 = arith.constant dense<0.000000e+00> : vector<8x128xf32>
    %32 = tpu.matmul %6, %9, %cst_30 {dimension_numbers = #tpu.dot_dimension_numbers<[1], [0], [0], [1], [0, 0, 1, 1], [], []>} : vector<8x128xf32>, vector<128x128xf32>, vector<8x128xf32> -> vector<8x128xf32>
    %33 = arith.addf %31, %32 : vector<8x128xf32>
    %c1_31 = arith.constant 1 : index
    %c0_32 = arith.constant 0 : index
    %c0_33 = arith.constant 0 : index
    %34 = vector.load %arg13[%c1_31, %c0_32, %c0_33] : memref<4x8x128xf32, #tpu.memory_space<vmem>>, vector<1x8x128xf32>
    %35 = vector.shape_cast %34 : vector<1x8x128xf32> to vector<8x128xf32>
    %36 = vector.shape_cast %33 : vector<8x128xf32> to vector<1x8x128xf32>
    tpu.vector_store %arg13[%c1_31, %c0_32, %c0_33], %36 {strides = array<i32>} : memref<4x8x128xf32, #tpu.memory_space<vmem>>, vector<1x8x128xf32>,
    %c2 = arith.constant 2 : index
    %c0_34 = arith.constant 0 : index
    %c0_35 = arith.constant 0 : index
    %37 = vector.load %arg13[%c2, %c0_34, %c0_35] : memref<4x8x128xf32, #tpu.memory_space<vmem>>, vector<1x8x128xf32>
    %38 = vector.shape_cast %37 : vector<1x8x128xf32> to vector<8x128xf32>
    %cst_36 = arith.constant dense<0.000000e+00> : vector<8x128xf32>
    %39 = tpu.matmul %3, %9, %cst_36 {dimension_numbers = #tpu.dot_dimension_numbers<[1], [0], [0], [1], [0, 0, 1, 1], [], []>} : vector<8x128xf32>, vector<128x128xf32>, vector<8x128xf32> -> vector<8x128xf32>
    %40 = arith.addf %38, %39 : vector<8x128xf32>
    %cst_37 = arith.constant dense<0.000000e+00> : vector<8x128xf32>
    %41 = tpu.matmul %4, %10, %cst_37 {dimension_numbers = #tpu.dot_dimension_numbers<[1], [0], [0], [1], [0, 0, 1, 1], [], []>} : vector<8x128xf32>, vector<128x128xf32>, vector<8x128xf32> -> vector<8x128xf32>
    %42 = arith.addf %40, %41 : vector<8x128xf32>
    %cst_38 = arith.constant dense<0.000000e+00> : vector<8x128xf32>
    %43 = tpu.matmul %5, %7, %cst_38 {dimension_numbers = #tpu.dot_dimension_numbers<[1], [0], [0], [1], [0, 0, 1, 1], [], []>} : vector<8x128xf32>, vector<128x128xf32>, vector<8x128xf32> -> vector<8x128xf32>
    %44 = arith.addf %42, %43 : vector<8x128xf32>
    %cst_39 = arith.constant dense<0.000000e+00> : vector<8x128xf32>
    %45 = tpu.matmul %6, %8, %cst_39 {dimension_numbers = #tpu.dot_dimension_numbers<[1], [0], [0], [1], [0, 0, 1, 1], [], []>} : vector<8x128xf32>, vector<128x128xf32>, vector<8x128xf32> -> vector<8x128xf32>
    %46 = arith.subf %44, %45 : vector<8x128xf32>
    %c2_40 = arith.constant 2 : index
    %c0_41 = arith.constant 0 : index
    %c0_42 = arith.constant 0 : index
    %47 = vector.load %arg13[%c2_40, %c0_41, %c0_42] : memref<4x8x128xf32, #tpu.memory_space<vmem>>, vector<1x8x128xf32>
    %48 = vector.shape_cast %47 : vector<1x8x128xf32> to vector<8x128xf32>
    %49 = vector.shape_cast %46 : vector<8x128xf32> to vector<1x8x128xf32>
    tpu.vector_store %arg13[%c2_40, %c0_41, %c0_42], %49 {strides = array<i32>} : memref<4x8x128xf32, #tpu.memory_space<vmem>>, vector<1x8x128xf32>,
    %c3 = arith.constant 3 : index
    %c0_43 = arith.constant 0 : index
    %c0_44 = arith.constant 0 : index
    %50 = vector.load %arg13[%c3, %c0_43, %c0_44] : memref<4x8x128xf32, #tpu.memory_space<vmem>>, vector<1x8x128xf32>
    %51 = vector.shape_cast %50 : vector<1x8x128xf32> to vector<8x128xf32>
    %cst_45 = arith.constant dense<0.000000e+00> : vector<8x128xf32>
    %52 = tpu.matmul %3, %10, %cst_45 {dimension_numbers = #tpu.dot_dimension_numbers<[1], [0], [0], [1], [0, 0, 1, 1], [], []>} : vector<8x128xf32>, vector<128x128xf32>, vector<8x128xf32> -> vector<8x128xf32>
    %53 = arith.addf %51, %52 : vector<8x128xf32>
    %cst_46 = arith.constant dense<0.000000e+00> : vector<8x128xf32>
    %54 = tpu.matmul %4, %9, %cst_46 {dimension_numbers = #tpu.dot_dimension_numbers<[1], [0], [0], [1], [0, 0, 1, 1], [], []>} : vector<8x128xf32>, vector<128x128xf32>, vector<8x128xf32> -> vector<8x128xf32>
    %55 = arith.subf %53, %54 : vector<8x128xf32>
    %cst_47 = arith.constant dense<0.000000e+00> : vector<8x128xf32>
    %56 = tpu.matmul %5, %8, %cst_47 {dimension_numbers = #tpu.dot_dimension_numbers<[1], [0], [0], [1], [0, 0, 1, 1], [], []>} : vector<8x128xf32>, vector<128x128xf32>, vector<8x128xf32> -> vector<8x128xf32>
    %57 = arith.addf %55, %56 : vector<8x128xf32>
    %cst_48 = arith.constant dense<0.000000e+00> : vector<8x128xf32>
    %58 = tpu.matmul %6, %7, %cst_48 {dimension_numbers = #tpu.dot_dimension_numbers<[1], [0], [0], [1], [0, 0, 1, 1], [], []>} : vector<8x128xf32>, vector<128x128xf32>, vector<8x128xf32> -> vector<8x128xf32>
    %59 = arith.addf %57, %58 : vector<8x128xf32>
    %c3_49 = arith.constant 3 : index
    %c0_50 = arith.constant 0 : index
    %c0_51 = arith.constant 0 : index
    %60 = vector.load %arg13[%c3_49, %c0_50, %c0_51] : memref<4x8x128xf32, #tpu.memory_space<vmem>>, vector<1x8x128xf32>
    %61 = vector.shape_cast %60 : vector<1x8x128xf32> to vector<8x128xf32>
    %62 = vector.shape_cast %59 : vector<8x128xf32> to vector<1x8x128xf32>
    tpu.vector_store %arg13[%c3_49, %c0_50, %c0_51], %62 {strides = array<i32>} : memref<4x8x128xf32, #tpu.memory_space<vmem>>, vector<1x8x128xf32>,
    %c0_i32_52 = arith.constant 0 : i32
    %63 = arith.cmpi eq, %arg2, %c0_i32_52 : i32
    %64 = arith.extui %63 : i1 to i32
    %c0_i32_53 = arith.constant 0 : i32
    %65 = arith.cmpi ne, %64, %c0_i32_53 : i32
    scf.if %65 {
      %c0_54 = arith.constant 0 : index
      %c0_55 = arith.constant 0 : index
      %c0_56 = arith.constant 0 : index
      %66 = vector.load %arg13[%c0_54, %c0_55, %c0_56] : memref<4x8x128xf32, #tpu.memory_space<vmem>>, vector<4x8x128xf32>
      %c0_57 = arith.constant 0 : index
      %c0_58 = arith.constant 0 : index
      %c0_59 = arith.constant 0 : index
      %67 = vector.load %arg12[%c0_57, %c0_58, %c0_59] : memref<4x8x128xf32, #tpu.memory_space<vmem>>, vector<4x8x128xf32>
      tpu.vector_store %arg12[%c0_57, %c0_58, %c0_59], %66 {strides = array<i32>} : memref<4x8x128xf32, #tpu.memory_space<vmem>>, vector<4x8x128xf32>,
    } else {
    }
    return
  }
  func.func @transform_0(%arg0: i32, %arg1: i32, %arg2: i32) -> (i32, i32) {
    %c0_i32 = arith.constant 0 : i32
    %0 = arith.addi %c0_i32, %arg2 : i32
    %c0_i32_0 = arith.constant 0 : i32
    return %arg0, %0 : i32, i32
  }
  func.func @transform_1(%arg0: i32, %arg1: i32, %arg2: i32) -> (i32, i32) {
    %c1_i32 = arith.constant 1 : i32
    %0 = arith.addi %c1_i32, %arg2 : i32
    %c0_i32 = arith.constant 0 : i32
    return %arg0, %0 : i32, i32
  }
  func.func @transform_2(%arg0: i32, %arg1: i32, %arg2: i32) -> (i32, i32) {
    %c2_i32 = arith.constant 2 : i32
    %0 = arith.addi %c2_i32, %arg2 : i32
    %c0_i32 = arith.constant 0 : i32
    return %arg0, %0 : i32, i32
  }
  func.func @transform_3(%arg0: i32, %arg1: i32, %arg2: i32) -> (i32, i32) {
    %c3_i32 = arith.constant 3 : i32
    %0 = arith.addi %c3_i32, %arg2 : i32
    %c0_i32 = arith.constant 0 : i32
    return %arg0, %0 : i32, i32
  }
  func.func @transform_4(%arg0: i32, %arg1: i32, %arg2: i32) -> (i32, i32) {
    %c0_i32 = arith.constant 0 : i32
    return %arg2, %arg1 : i32, i32
  }
  func.func @transform_5(%arg0: i32, %arg1: i32, %arg2: i32) -> (i32, i32) {
    %c0_i32 = arith.constant 0 : i32
    return %arg2, %arg1 : i32, i32
  }
  func.func @transform_6(%arg0: i32, %arg1: i32, %arg2: i32) -> (i32, i32) {
    %c0_i32 = arith.constant 0 : i32
    return %arg2, %arg1 : i32, i32
  }
  func.func @transform_7(%arg0: i32, %arg1: i32, %arg2: i32) -> (i32, i32) {
    %c0_i32 = arith.constant 0 : i32
    return %arg2, %arg1 : i32, i32
  }
  func.func @transform_8(%arg0: i32, %arg1: i32, %arg2: i32) -> (i32, i32) {
    %c0_i32 = arith.constant 0 : i32
    %c0_i32_0 = arith.constant 0 : i32
    return %c0_i32, %arg1 : i32, i32
  }
  func.func @transform_9(%arg0: i32, %arg1: i32, %arg2: i32) -> (i32, i32, i32) {
    %c0_i32 = arith.constant 0 : i32
    %c0_i32_0 = arith.constant 0 : i32
    return %c0_i32, %arg0, %arg1 : i32, i32, i32
  }
}

</mosaic_0001>

<llo_original>
// kernel: tpu_custom_call.1
$region0: #{tpu_custom_call.1}
  #allocation0 [shape = 'u32[]', space=smem, size = 0x4, offset = 0x4, fixed_abs, tag = 'smem constant byte address 0x4 - core index']
  #allocation1 [shape = 'u32[144,128]{1,0:T(1,128)}', space=vmem, size = 0x12000, scoped, tag = 'internal scratch']
  #allocation2 [shape = 'f32[4,8,128]{2,1,0:T(8,128)}', space=vmem, size = 0x4000, scoped, tag = 'scratch operand']
  %s0 = inlined_call_operand.hbm [shape: f32[8,512], index: 0, kind: input, shape index: {}]
  %s1 = inlined_call_operand.hbm [shape: f32[8,512], index: 1, kind: input, shape index: {}]
  %s2 = inlined_call_operand.hbm [shape: f32[8,512], index: 2, kind: input, shape index: {}]
  %s3 = inlined_call_operand.hbm [shape: f32[8,512], index: 3, kind: input, shape index: {}]
  %s4 = inlined_call_operand.hbm [shape: f32[128,128], index: 4, kind: input, shape index: {}]
  %s5 = inlined_call_operand.hbm [shape: f32[128,128], index: 5, kind: input, shape index: {}]
  %s6 = inlined_call_operand.hbm [shape: f32[128,128], index: 6, kind: input, shape index: {}]
  %s7 = inlined_call_operand.hbm [shape: f32[128,128], index: 7, kind: input, shape index: {}]
  %s8 = inlined_call_operand.vmem [shape: f32[4,128], index: 8, kind: input, shape index: {}]
  %s9 = inlined_call_operand.hbm [shape: f32[4,8,128], index: 9, kind: output, shape index: {}]
  %s10 = sld [smem:[#allocation0]]
  $region86: #{tpu_custom_call.1} parent=0
    _
  %s12 = ssub.s32 1, %s10
  %s13 = scalar_select 0, %s12, %s10
  $region1: #{tpu_custom_call.1} parent=0
    #allocation3 [shape = 'u8[4096]{0}', space=vmem, size = 0x1000, scoped, tag = 'input window, operand 0, single buffered']
    #allocation4 [shape = 's32[1]{0}', space=sflag, size = 0x4, scoped, tag = 'scoped memory for tpu_custom_call.1']
    #allocation5 [shape = 's32[1]{0}', space=sflag, size = 0x4, scoped, tag = 'scoped memory for tpu_custom_call.1']
    #allocation6 [shape = 'u8[4096]{0}', space=vmem, size = 0x1000, scoped, tag = 'input window, operand 1, single buffered']
    #allocation7 [shape = 's32[1]{0}', space=sflag, size = 0x4, scoped, tag = 'scoped memory for tpu_custom_call.1']
    #allocation8 [shape = 'u8[4096]{0}', space=vmem, size = 0x1000, scoped, tag = 'input window, operand 2, single buffered']
    #allocation9 [shape = 'u8[4096]{0}', space=vmem, size = 0x1000, scoped, tag = 'input window, operand 3, single buffered']
    #allocation10 [shape = 's32[1]{0}', space=sflag, size = 0x4, scoped, tag = 'scoped memory for tpu_custom_call.1']
    #allocation11 [shape = 'u8[65536]{0}', space=vmem, size = 0x10000, scoped, tag = 'input window, operand 4, single buffered']
    #allocation12 [shape = 'u8[65536]{0}', space=vmem, size = 0x10000, scoped, tag = 'input window, operand 5, single buffered']
    #allocation13 [shape = 's32[1]{0}', space=sflag, size = 0x4, scoped, tag = 'scoped memory for tpu_custom_call.1']
    #allocation14 [shape = 'u8[65536]{0}', space=vmem, size = 0x10000, scoped, tag = 'input window, operand 6, single buffered']
    #allocation15 [shape = 'u8[65536]{0}', space=vmem, size = 0x10000, scoped, tag = 'input window, operand 7, single buffered']
    #allocation16 [shape = 's32[1]{0}', space=sflag, size = 0x4, scoped, tag = 'scoped memory for tpu_custom_call.1']
    #allocation17 [shape = 'u8[16384]{0}', space=vmem, size = 0x4000, scoped, tag = 'output window, operand 0, single buffered']
    %14 = vsyncpa [#allocation4], 0
    %15 = vsyncpa [#allocation7], 0
    %16 = vsyncpa [#allocation10], 0
    %17 = vsyncpa [#allocation13], 0
    %18 = vsyncpa [#allocation16], 0
    %19 = vsyncpa [#allocation5], 0
    // Predicated region
    $region2: #{tpu_custom_call.1} parent=1 // pred_check
      _
    $region3: #{tpu_custom_call.1} parent=1 // pred_check_branch
      %21 = sbr.rel (0) target = $region5
    $region4: #{tpu_custom_call.1} parent=1 // pred_region
      %s23 = ssub.s32 128, 128
      %24 = vsyncadd [#allocation4], %s23
      %s26 = sshll.u32 [#allocation3], 4
      %s27 = int_to_ptr.vmem [resolvable:$true] %s26
      %29 = dma.hbm_to_vmem [thread:$0]  %s0, 128, %s27, [#allocation4]
    $region5: #{tpu_custom_call.1} parent=1 // pred_fallthru
      _
    // Predicated region
    $region6: #{tpu_custom_call.1} parent=1 // pred_check
      _
    $region7: #{tpu_custom_call.1} parent=1 // pred_check_branch
      %31 = sbr.rel (0) target = $region9
    $region8: #{tpu_custom_call.1} parent=1 // pred_region
      %s32 = sadd.s32 0, 1
      %s34 = ssub.s32 128, 128
      %35 = vsyncadd [#allocation7], %s34
      %s36 = smul.addr %s32, 128
      %s37 = scalar_lea.hbm %s1, %s36
      %s39 = sshll.u32 [#allocation6], 4
      %s40 = int_to_ptr.vmem [resolvable:$true] %s39
      %42 = dma.hbm_to_vmem [thread:$0]  %s37, 128, %s40, [#allocation7]
    $region9: #{tpu_custom_call.1} parent=1 // pred_fallthru
      _
    // Predicated region
    $region10: #{tpu_custom_call.1} parent=1 // pred_check
      _
    $region11: #{tpu_custom_call.1} parent=1 // pred_check_branch
      %44 = sbr.rel (0) target = $region13
    $region12: #{tpu_custom_call.1} parent=1 // pred_region
      %s45 = sadd.s32 0, 2
      %s47 = ssub.s32 128, 128
      %48 = vsyncadd [#allocation7], %s47
      %s49 = smul.addr %s45, 128
      %s50 = scalar_lea.hbm %s2, %s49
      %s52 = sshll.u32 [#allocation8], 4
      %s53 = int_to_ptr.vmem [resolvable:$true] %s52
      %55 = dma.hbm_to_vmem [thread:$0]  %s50, 128, %s53, [#allocation7]
    $region13: #{tpu_custom_call.1} parent=1 // pred_fallthru
      _
    // Predicated region
    $region14: #{tpu_custom_call.1} parent=1 // pred_check
      _
    $region15: #{tpu_custom_call.1} parent=1 // pred_check_branch
      %57 = sbr.rel (0) target = $region17
    $region16: #{tpu_custom_call.1} parent=1 // pred_region
      %s58 = sadd.s32 0, 3
      %s60 = ssub.s32 128, 128
      %61 = vsyncadd [#allocation10], %s60
      %s62 = smul.addr %s58, 128
      %s63 = scalar_lea.hbm %s3, %s62
      %s65 = sshll.u32 [#allocation9], 4
      %s66 = int_to_ptr.vmem [resolvable:$true] %s65
      %68 = dma.hbm_to_vmem [thread:$0]  %s63, 128, %s66, [#allocation10]
    $region17: #{tpu_custom_call.1} parent=1 // pred_fallthru
      _
    // Predicated region
    $region18: #{tpu_custom_call.1} parent=1 // pred_check
      _
    $region19: #{tpu_custom_call.1} parent=1 // pred_check_branch
      %70 = sbr.rel (0) target = $region21
    $region20: #{tpu_custom_call.1} parent=1 // pred_region
      %s72 = ssub.s32 2048, 2048
      %73 = vsyncadd [#allocation10], %s72
      %s74 = sshll.u32 [#allocation11], 4
      %s75 = int_to_ptr.vmem [resolvable:$true] %s74
      %80 = dma.hbm_to_vmem [thread:$0]  %s4, 2048, %s75, [#allocation10], 128, 128, 8
    $region21: #{tpu_custom_call.1} parent=1 // pred_fallthru
      _
    // Predicated region
    $region22: #{tpu_custom_call.1} parent=1 // pred_check
      _
    $region23: #{tpu_custom_call.1} parent=1 // pred_check_branch
      %82 = sbr.rel (0) target = $region25
    $region24: #{tpu_custom_call.1} parent=1 // pred_region
      %s84 = ssub.s32 2048, 2048
      %85 = vsyncadd [#allocation13], %s84
      %s86 = sshll.u32 [#allocation12], 4
      %s87 = int_to_ptr.vmem [resolvable:$true] %s86
      %92 = dma.hbm_to_vmem [thread:$0]  %s5, 2048, %s87, [#allocation13], 128, 128, 8
    $region25: #{tpu_custom_call.1} parent=1 // pred_fallthru
      _
    // Predicated region
    $region26: #{tpu_custom_call.1} parent=1 // pred_check
      _
    $region27: #{tpu_custom_call.1} parent=1 // pred_check_branch
      %94 = sbr.rel (0) target = $region29
    $region28: #{tpu_custom_call.1} parent=1 // pred_region
      %s96 = ssub.s32 2048, 2048
      %97 = vsyncadd [#allocation13], %s96
      %s98 = sshll.u32 [#allocation14], 4
      %s99 = int_to_ptr.vmem [resolvable:$true] %s98
      %104 = dma.hbm_to_vmem [thread:$0]  %s6, 2048, %s99, [#allocation13], 128, 128, 8
    $region29: #{tpu_custom_call.1} parent=1 // pred_fallthru
      _
    // Predicated region
    $region30: #{tpu_custom_call.1} parent=1 // pred_check
      _
    $region31: #{tpu_custom_call.1} parent=1 // pred_check_branch
      %106 = sbr.rel (0) target = $region33
    $region32: #{tpu_custom_call.1} parent=1 // pred_region
      %s108 = ssub.s32 2048, 2048
      %109 = vsyncadd [#allocation16], %s108
      %s110 = sshll.u32 [#allocation15], 4
      %s111 = int_to_ptr.vmem [resolvable:$true] %s110
      %116 = dma.hbm_to_vmem [thread:$0]  %s7, 2048, %s111, [#allocation16], 128, 128, 8
    $region33: #{tpu_custom_call.1} parent=1 // pred_fallthru
      _
    // Predicated region
    $region34: #{tpu_custom_call.1} parent=1 // pred_check
      _
    $region35: #{tpu_custom_call.1} parent=1 // pred_check_branch
      %118 = sbr.rel (0) target = $region37
    $region36: #{tpu_custom_call.1} parent=1 // pred_region
      _
    $region37: #{tpu_custom_call.1} parent=1 // pred_fallthru
      _
    // Predicated region
    $region38: #{tpu_custom_call.1} parent=1 // pred_check
      _
    $region39: #{tpu_custom_call.1} parent=1 // pred_check_branch
      %120 = sbr.rel (0) target = $region41
    $region40: #{tpu_custom_call.1} parent=1 // pred_region
      %121 = dma.done [#allocation4], 128
    $region41: #{tpu_custom_call.1} parent=1 // pred_fallthru
      _
    // Predicated region
    $region42: #{tpu_custom_call.1} parent=1 // pred_check
      _
    $region43: #{tpu_custom_call.1} parent=1 // pred_check_branch
      %123 = sbr.rel (0) target = $region45
    $region44: #{tpu_custom_call.1} parent=1 // pred_region
      %124 = dma.done [#allocation7], 128
    $region45: #{tpu_custom_call.1} parent=1 // pred_fallthru
      _
    // Predicated region
    $region46: #{tpu_custom_call.1} parent=1 // pred_check
      _
    $region47: #{tpu_custom_call.1} parent=1 // pred_check_branch
      %126 = sbr.rel (0) target = $region49
    $region48: #{tpu_custom_call.1} parent=1 // pred_region
      %127 = dma.done [#allocation7], 128
    $region49: #{tpu_custom_call.1} parent=1 // pred_fallthru
      _
    // Predicated region
    $region50: #{tpu_custom_call.1} parent=1 // pred_check
      _
    $region51: #{tpu_custom_call.1} parent=1 // pred_check_branch
      %129 = sbr.rel (0) target = $region53
    $region52: #{tpu_custom_call.1} parent=1 // pred_region
      %130 = dma.done [#allocation10], 128
    $region53: #{tpu_custom_call.1} parent=1 // pred_fallthru
      _
    // Predicated region
    $region54: #{tpu_custom_call.1} parent=1 // pred_check
      _
    $region55: #{tpu_custom_call.1} parent=1 // pred_check_branch
      %132 = sbr.rel (0) target = $region57
    $region56: #{tpu_custom_call.1} parent=1 // pred_region
      %133 = dma.done [#allocation10], 2048
    $region57: #{tpu_custom_call.1} parent=1 // pred_fallthru
      _
    // Predicated region
    $region58: #{tpu_custom_call.1} parent=1 // pred_check
      _
    $region59: #{tpu_custom_call.1} parent=1 // pred_check_branch
      %135 = sbr.rel (0) target = $region61
    $region60: #{tpu_custom_call.1} parent=1 // pred_region
      %136 = dma.done [#allocation13], 2048
    $region61: #{tpu_custom_call.1} parent=1 // pred_fallthru
      _
    // Predicated region
    $region62: #{tpu_custom_call.1} parent=1 // pred_check
      _
    $region63: #{tpu_custom_call.1} parent=1 // pred_check_branch
      %138 = sbr.rel (0) target = $region65
    $region64: #{tpu_custom_call.1} parent=1 // pred_region
      %139 = dma.done [#allocation13], 2048
    $region65: #{tpu_custom_call.1} parent=1 // pred_fallthru
      _
    // Predicated region
    $region66: #{tpu_custom_call.1} parent=1 // pred_check
      _
    $region67: #{tpu_custom_call.1} parent=1 // pred_check_branch
      %141 = sbr.rel (0) target = $region69
    $region68: #{tpu_custom_call.1} parent=1 // pred_region
      %142 = dma.done [#allocation16], 2048
    $region69: #{tpu_custom_call.1} parent=1 // pred_fallthru
      _
    %s143 = sadd.s32 0, 1
    %s144 = sadd.s32 0, 2
    %s145 = sadd.s32 0, 3
    %p146 = scmp.eq.s32.totalorder 0, 0
    // Predicated region
    $region70: #{tpu_custom_call.1} parent=1 // pred_check
      %p147 = pneg %p146
    $region71: #{tpu_custom_call.1} parent=1 // pred_check_branch
      %149 = sbr.rel (%p147) target = $region73
    $region72: #{tpu_custom_call.1} parent=1 // pred_region
      %v150 = vld [vmem:[%s8] sm:$0xf]
      %v153 = vunpack.c.l.s4 1966171168
      %v154 = vunpack.c.0.s8 %v153
      %v155 = vlaneseq
      %v156 = vshrl.u32 %v155, 7
      %v157 = vsub.s32 %v154, %v156
      %v158 = vrot.slane %v150, %v157
      %v159 = vcombine.high %v158, %v158
      %v161 = vunpack.c.l.s4 1966171168
      %v162 = vunpack.c.0.s8 %v161
      %v163 = vlaneseq
      %v164 = vshrl.u32 %v163, 7
      %v165 = vsub.s32 %v162, %v164
      %v166 = vrot.slane %v158, %v165
      %v168 = vunpack.c.l.s4 1966171168
      %v169 = vunpack.c.0.s8 %v168
      %v170 = vlaneseq
      %v171 = vshrl.u32 %v170, 7
      %v172 = vsub.s32 %v169, %v171
      %v173 = vrot.slane %v159, %v172
      %v174 = vcombine.high %v166, %v166
      %v175 = vcombine.high %v173, %v173
      %v176 = vlaneseq
      %v177 = vshrl.u32 %v176, 7
      %v178 = vsub.s32 0, %v177
      %v179 = vrot.slane %v166, %v178
      %v180 = vlaneseq
      %v181 = vshrl.u32 %v180, 7
      %v182 = vsub.s32 0, %v181
      %v183 = vrot.slane %v173, %v182
      %v184 = vlaneseq
      %v185 = vshrl.u32 %v184, 7
      %v186 = vsub.s32 0, %v185
      %v187 = vrot.slane %v174, %v186
      %v188 = vlaneseq
      %v189 = vshrl.u32 %v188, 7
      %v190 = vsub.s32 0, %v189
      %v191 = vrot.slane %v175, %v190
      %196 = vst [vmem:[#allocation2] sm:$0xff] %v179
      %197 = vst [vmem:[#allocation2 + $0x8] sm:$0xff] %v183
      %198 = vst [vmem:[#allocation2 + $0x10] sm:$0xff] %v187
      %199 = vst [vmem:[#allocation2 + $0x18] sm:$0xff] %v191
    $region73: #{tpu_custom_call.1} parent=1 // pred_fallthru
      _
    %v200 = vld [vmem:[#allocation3] sm:$0xff]
    %v201 = vld [vmem:[#allocation6] sm:$0xff]
    %v202 = vld [vmem:[#allocation8] sm:$0xff]
    %v203 = vld [vmem:[#allocation9] sm:$0xff]
    %v204 = vld [vmem:[#allocation11] sm:$0xff]
    %v205 = vld [vmem:[#allocation11 + $0x8] sm:$0xff]
    %v206 = vld [vmem:[#allocation11 + $0x10] sm:$0xff]
    %v207 = vld [vmem:[#allocation11 + $0x18] sm:$0xff]
    %v208 = vld [vmem:[#allocation11 + $0x20] sm:$0xff]
    %v209 = vld [vmem:[#allocation11 + $0x28] sm:$0xff]
    %v210 = vld [vmem:[#allocation11 + $0x30] sm:$0xff]
    %v211 = vld [vmem:[#allocation11 + $0x38] sm:$0xff]
    %v212 = vld [vmem:[#allocation11 + $0x40] sm:$0xff]
    %v213 = vld [vmem:[#allocation11 + $0x48] sm:$0xff]
    %v214 = vld [vmem:[#allocation11 + $0x50] sm:$0xff]
    %v215 = vld [vmem:[#allocation11 + $0x58] sm:$0xff]
    %v216 = vld [vmem:[#allocation11 + $0x60] sm:$0xff]
    %v217 = vld [vmem:[#allocation11 + $0x68] sm:$0xff]
    %v218 = vld [vmem:[#allocation11 + $0x70] sm:$0xff]
    %v219 = vld [vmem:[#allocation11 + $0x78] sm:$0xff]
    %v220 = vld [vmem:[#allocation12] sm:$0xff]
    %v221 = vld [vmem:[#allocation12 + $0x8] sm:$0xff]
    %v222 = vld [vmem:[#allocation12 + $0x10] sm:$0xff]
    %v223 = vld [vmem:[#allocation12 + $0x18] sm:$0xff]
    %v224 = vld [vmem:[#allocation12 + $0x20] sm:$0xff]
    %v225 = vld [vmem:[#allocation12 + $0x28] sm:$0xff]
    %v226 = vld [vmem:[#allocation12 + $0x30] sm:$0xff]
    %v227 = vld [vmem:[#allocation12 + $0x38] sm:$0xff]
    %v228 = vld [vmem:[#allocation12 + $0x40] sm:$0xff]
    %v229 = vld [vmem:[#allocation12 + $0x48] sm:$0xff]
    %v230 = vld [vmem:[#allocation12 + $0x50] sm:$0xff]
    %v231 = vld [vmem:[#allocation12 + $0x58] sm:$0xff]
    %v232 = vld [vmem:[#allocation12 + $0x60] sm:$0xff]
    %v233 = vld [vmem:[#allocation12 + $0x68] sm:$0xff]
    %v234 = vld [vmem:[#allocation12 + $0x70] sm:$0xff]
    %v235 = vld [vmem:[#allocation12 + $0x78] sm:$0xff]
    %v236 = vld [vmem:[#allocation14] sm:$0xff]
    %v237 = vld [vmem:[#allocation14 + $0x8] sm:$0xff]
    %v238 = vld [vmem:[#allocation14 + $0x10] sm:$0xff]
    %v239 = vld [vmem:[#allocation14 + $0x18] sm:$0xff]
    %v240 = vld [vmem:[#allocation14 + $0x20] sm:$0xff]
    %v241 = vld [vmem:[#allocation14 + $0x28] sm:$0xff]
    %v242 = vld [vmem:[#allocation14 + $0x30] sm:$0xff]
    %v243 = vld [vmem:[#allocation14 + $0x38] sm:$0xff]
    %v244 = vld [vmem:[#allocation14 + $0x40] sm:$0xff]
    %v245 = vld [vmem:[#allocation14 + $0x48] sm:$0xff]
    %v246 = vld [vmem:[#allocation14 + $0x50] sm:$0xff]
    %v247 = vld [vmem:[#allocation14 + $0x58] sm:$0xff]
    %v248 = vld [vmem:[#allocation14 + $0x60] sm:$0xff]
    %v249 = vld [vmem:[#allocation14 + $0x68] sm:$0xff]
    %v250 = vld [vmem:[#allocation14 + $0x70] sm:$0xff]
    %v251 = vld [vmem:[#allocation14 + $0x78] sm:$0xff]
    %v252 = vld [vmem:[#allocation15] sm:$0xff]
    %v253 = vld [vmem:[#allocation15 + $0x8] sm:$0xff]
    %v254 = vld [vmem:[#allocation15 + $0x10] sm:$0xff]
    %v255 = vld [vmem:[#allocation15 + $0x18] sm:$0xff]
    %v256 = vld [vmem:[#allocation15 + $0x20] sm:$0xff]
    %v257 = vld [vmem:[#allocation15 + $0x28] sm:$0xff]
    %v258 = vld [vmem:[#allocation15 + $0x30] sm:$0xff]
    %v259 = vld [vmem:[#allocation15 + $0x38] sm:$0xff]
    %v260 = vld [vmem:[#allocation15 + $0x40] sm:$0xff]
    %v261 = vld [vmem:[#allocation15 + $0x48] sm:$0xff]
    %v262 = vld [vmem:[#allocation15 + $0x50] sm:$0xff]
    %v263 = vld [vmem:[#allocation15 + $0x58] sm:$0xff]
    %v264 = vld [vmem:[#allocation15 + $0x60] sm:$0xff]
    %v265 = vld [vmem:[#allocation15 + $0x68] sm:$0xff]
    %v266 = vld [vmem:[#allocation15 + $0x70] sm:$0xff]
    %v267 = vld [vmem:[#allocation15 + $0x78] sm:$0xff]
    %v268 = vld [vmem:[#allocation2] sm:$0xff]
    %269 = vmatprep.subr.mxu0 0.0
    %270 = vmatpush1.msra.mxu0 %v204
    %271 = vmatprep.subr.mxu0 0.0
    %272 = vmatpush1.msra.mxu0 %v205
    %273 = vmatprep.subr.mxu0 0.0
    %274 = vmatpush1.msra.mxu0 %v206
    %275 = vmatprep.subr.mxu0 0.0
    %276 = vmatpush1.msra.mxu0 %v207
    %277 = vmatprep.subr.mxu0 0.0
    %278 = vmatpush1.msra.mxu0 %v208
    %279 = vmatprep.subr.mxu0 0.0
    %280 = vmatpush1.msra.mxu0 %v209
    %281 = vmatprep.subr.mxu0 0.0
    %282 = vmatpush1.msra.mxu0 %v210
    %283 = vmatprep.subr.mxu0 0.0
    %284 = vmatpush1.msra.mxu0 %v211
    %285 = vmatprep.subr.mxu0 0.0
    %286 = vmatpush1.msra.mxu0 %v212
    %287 = vmatprep.subr.mxu0 0.0
    %288 = vmatpush1.msra.mxu0 %v213
    %289 = vmatprep.subr.mxu0 0.0
    %290 = vmatpush1.msra.mxu0 %v214
    %291 = vmatprep.subr.mxu0 0.0
    %292 = vmatpush1.msra.mxu0 %v215
    %293 = vmatprep.subr.mxu0 0.0
    %294 = vmatpush1.msra.mxu0 %v216
    %295 = vmatprep.subr.mxu0 0.0
    %296 = vmatpush1.msra.mxu0 %v217
    %297 = vmatprep.subr.mxu0 0.0
    %298 = vmatpush1.msra.mxu0 %v218
    %299 = vmatprep.subr.mxu0 0.0
    %300 = vmatpush1.msra.mxu0 %v219
    %301 = vmatprep.subr.mxu0 0.0
    %302 = vmatpush1.msra.mxu0 0.0
    %303 = vmatprep.subr.mxu0 0.0
    %304 = vmatpush1.msra.mxu0 0.0
    %305 = vmatprep.subr.mxu0 0.0
    %306 = vmatpush1.msra.mxu0 0.0
    %307 = vmatprep.subr.mxu0 0.0
    %308 = vmatpush1.msra.mxu0 0.0
    %309 = vmatprep.subr.mxu0 0.0
    %310 = vmatpush1.msra.mxu0 0.0
    %311 = vmatprep.subr.mxu0 0.0
    %312 = vmatpush1.msra.mxu0 0.0
    %313 = vmatprep.subr.mxu0 0.0
    %314 = vmatpush1.msra.mxu0 0.0
    %315 = vmatprep.subr.mxu0 0.0
    %316 = vmatpush1.msra.mxu0 0.0
    %317 = vmatprep.subr.mxu0 0.0
    %318 = vmatpush1.msra.mxu0 0.0
    %319 = vmatprep.subr.mxu0 0.0
    %320 = vmatpush1.msra.mxu0 0.0
    %321 = vmatprep.subr.mxu0 0.0
    %322 = vmatpush1.msra.mxu0 0.0
    %323 = vmatprep.subr.mxu0 0.0
    %324 = vmatpush1.msra.mxu0 0.0
    %325 = vmatprep.subr.mxu0 0.0
    %326 = vmatpush1.msra.mxu0 0.0
    %327 = vmatprep.subr.mxu0 0.0
    %328 = vmatpush1.msra.mxu0 0.0
    %329 = vmatprep.subr.mxu0 0.0
    %330 = vmatpush1.msra.mxu0 0.0
    %331 = vmatprep.subr.mxu0 0.0
    %332 = vmatpush1.msra.mxu0 0.0
    %333 = vmatprep.mubr.f32.mxu0 0.0
    %334 = vmatmul.mubr.f32.gmra.mrb[0].mxu0 %v200
    %v335 = vpop.f32.mrb[0].mxu0
    %v336 = vadd.f32 0.0, %v335
    %v337 = vpop.f32.mrb[0].mxu0
    %338 = vdwg.mxu0
    %v339 = vadd.f32 %v268, %v336
    %340 = vmatprep.subr.mxu0 0.0
    %341 = vmatpush1.msra.mxu0 %v220
    %342 = vmatprep.subr.mxu0 0.0
    %343 = vmatpush1.msra.mxu0 %v221
    %344 = vmatprep.subr.mxu0 0.0
    %345 = vmatpush1.msra.mxu0 %v222
    %346 = vmatprep.subr.mxu0 0.0
    %347 = vmatpush1.msra.mxu0 %v223
    %348 = vmatprep.subr.mxu0 0.0
    %349 = vmatpush1.msra.mxu0 %v224
    %350 = vmatprep.subr.mxu0 0.0
    %351 = vmatpush1.msra.mxu0 %v225
    %352 = vmatprep.subr.mxu0 0.0
    %353 = vmatpush1.msra.mxu0 %v226
    %354 = vmatprep.subr.mxu0 0.0
    %355 = vmatpush1.msra.mxu0 %v227
    %356 = vmatprep.subr.mxu0 0.0
    %357 = vmatpush1.msra.mxu0 %v228
    %358 = vmatprep.subr.mxu0 0.0
    %359 = vmatpush1.msra.mxu0 %v229
    %360 = vmatprep.subr.mxu0 0.0
    %361 = vmatpush1.msra.mxu0 %v230
    %362 = vmatprep.subr.mxu0 0.0
    %363 = vmatpush1.msra.mxu0 %v231
    %364 = vmatprep.subr.mxu0 0.0
    %365 = vmatpush1.msra.mxu0 %v232
    %366 = vmatprep.subr.mxu0 0.0
    %367 = vmatpush1.msra.mxu0 %v233
    %368 = vmatprep.subr.mxu0 0.0
    %369 = vmatpush1.msra.mxu0 %v234
    %370 = vmatprep.subr.mxu0 0.0
    %371 = vmatpush1.msra.mxu0 %v235
    %372 = vmatprep.subr.mxu0 0.0
    %373 = vmatpush1.msra.mxu0 0.0
    %374 = vmatprep.subr.mxu0 0.0
    %375 = vmatpush1.msra.mxu0 0.0
    %376 = vmatprep.subr.mxu0 0.0
    %377 = vmatpush1.msra.mxu0 0.0
    %378 = vmatprep.subr.mxu0 0.0
    %379 = vmatpush1.msra.mxu0 0.0
    %380 = vmatprep.subr.mxu0 0.0
    %381 = vmatpush1.msra.mxu0 0.0
    %382 = vmatprep.subr.mxu0 0.0
    %383 = vmatpush1.msra.mxu0 0.0
    %384 = vmatprep.subr.mxu0 0.0
    %385 = vmatpush1.msra.mxu0 0.0
    %386 = vmatprep.subr.mxu0 0.0
    %387 = vmatpush1.msra.mxu0 0.0
    %388 = vmatprep.subr.mxu0 0.0
    %389 = vmatpush1.msra.mxu0 0.0
    %390 = vmatprep.subr.mxu0 0.0
    %391 = vmatpush1.msra.mxu0 0.0
    %392 = vmatprep.subr.mxu0 0.0
    %393 = vmatpush1.msra.mxu0 0.0
    %394 = vmatprep.subr.mxu0 0.0
    %395 = vmatpush1.msra.mxu0 0.0
    %396 = vmatprep.subr.mxu0 0.0
    %397 = vmatpush1.msra.mxu0 0.0
    %398 = vmatprep.subr.mxu0 0.0
    %399 = vmatpush1.msra.mxu0 0.0
    %400 = vmatprep.subr.mxu0 0.0
    %401 = vmatpush1.msra.mxu0 0.0
    %402 = vmatprep.subr.mxu0 0.0
    %403 = vmatpush1.msra.mxu0 0.0
    %404 = vmatprep.mubr.f32.mxu0 0.0
    %405 = vmatmul.mubr.f32.gmra.mrb[0].mxu0 %v201
    %v406 = vpop.f32.mrb[0].mxu0
    %v407 = vadd.f32 0.0, %v406
    %v408 = vpop.f32.mrb[0].mxu0
    %409 = vdwg.mxu0
    %v410 = vsub.f32 %v339, %v407
    %411 = vmatprep.subr.mxu0 0.0
    %412 = vmatpush1.msra.mxu0 %v236
    %413 = vmatprep.subr.mxu0 0.0
    %414 = vmatpush1.msra.mxu0 %v237
    %415 = vmatprep.subr.mxu0 0.0
    %416 = vmatpush1.msra.mxu0 %v238
    %417 = vmatprep.subr.mxu0 0.0
    %418 = vmatpush1.msra.mxu0 %v239
    %419 = vmatprep.subr.mxu0 0.0
    %420 = vmatpush1.msra.mxu0 %v240
    %421 = vmatprep.subr.mxu0 0.0
    %422 = vmatpush1.msra.mxu0 %v241
    %423 = vmatprep.subr.mxu0 0.0
    %424 = vmatpush1.msra.mxu0 %v242
    %425 = vmatprep.subr.mxu0 0.0
    %426 = vmatpush1.msra.mxu0 %v243
    %427 = vmatprep.subr.mxu0 0.0
    %428 = vmatpush1.msra.mxu0 %v244
    %429 = vmatprep.subr.mxu0 0.0
    %430 = vmatpush1.msra.mxu0 %v245
    %431 = vmatprep.subr.mxu0 0.0
    %432 = vmatpush1.msra.mxu0 %v246
    %433 = vmatprep.subr.mxu0 0.0
    %434 = vmatpush1.msra.mxu0 %v247
    %435 = vmatprep.subr.mxu0 0.0
    %436 = vmatpush1.msra.mxu0 %v248
    %437 = vmatprep.subr.mxu0 0.0
    %438 = vmatpush1.msra.mxu0 %v249
    %439 = vmatprep.subr.mxu0 0.0
    %440 = vmatpush1.msra.mxu0 %v250
    %441 = vmatprep.subr.mxu0 0.0
    %442 = vmatpush1.msra.mxu0 %v251
    %443 = vmatprep.subr.mxu0 0.0
    %444 = vmatpush1.msra.mxu0 0.0
    %445 = vmatprep.subr.mxu0 0.0
    %446 = vmatpush1.msra.mxu0 0.0
    %447 = vmatprep.subr.mxu0 0.0
    %448 = vmatpush1.msra.mxu0 0.0
    %449 = vmatprep.subr.mxu0 0.0
    %450 = vmatpush1.msra.mxu0 0.0
    %451 = vmatprep.subr.mxu0 0.0
    %452 = vmatpush1.msra.mxu0 0.0
    %453 = vmatprep.subr.mxu0 0.0
    %454 = vmatpush1.msra.mxu0 0.0
    %455 = vmatprep.subr.mxu0 0.0
    %456 = vmatpush1.msra.mxu0 0.0
    %457 = vmatprep.subr.mxu0 0.0
    %458 = vmatpush1.msra.mxu0 0.0
    %459 = vmatprep.subr.mxu0 0.0
    %460 = vmatpush1.msra.mxu0 0.0
    %461 = vmatprep.subr.mxu0 0.0
    %462 = vmatpush1.msra.mxu0 0.0
    %463 = vmatprep.subr.mxu0 0.0
    %464 = vmatpush1.msra.mxu0 0.0
    %465 = vmatprep.subr.mxu0 0.0
    %466 = vmatpush1.msra.mxu0 0.0
    %467 = vmatprep.subr.mxu0 0.0
    %468 = vmatpush1.msra.mxu0 0.0
    %469 = vmatprep.subr.mxu0 0.0
    %470 = vmatpush1.msra.mxu0 0.0
    %471 = vmatprep.subr.mxu0 0.0
    %472 = vmatpush1.msra.mxu0 0.0
    %473 = vmatprep.subr.mxu0 0.0
    %474 = vmatpush1.msra.mxu0 0.0
    %475 = vmatprep.mubr.f32.mxu0 0.0
    %476 = vmatmul.mubr.f32.gmra.mrb[0].mxu0 %v202
    %v477 = vpop.f32.mrb[0].mxu0
    %v478 = vadd.f32 0.0, %v477
    %v479 = vpop.f32.mrb[0].mxu0
    %480 = vdwg.mxu0
    %v481 = vsub.f32 %v410, %v478
    %482 = vmatprep.subr.mxu0 0.0
    %483 = vmatpush1.msra.mxu0 %v252
    %484 = vmatprep.subr.mxu0 0.0
    %485 = vmatpush1.msra.mxu0 %v253
    %486 = vmatprep.subr.mxu0 0.0
    %487 = vmatpush1.msra.mxu0 %v254
    %488 = vmatprep.subr.mxu0 0.0
    %489 = vmatpush1.msra.mxu0 %v255
    %490 = vmatprep.subr.mxu0 0.0
    %491 = vmatpush1.msra.mxu0 %v256
    %492 = vmatprep.subr.mxu0 0.0
    %493 = vmatpush1.msra.mxu0 %v257
    %494 = vmatprep.subr.mxu0 0.0
    %495 = vmatpush1.msra.mxu0 %v258
    %496 = vmatprep.subr.mxu0 0.0
    %497 = vmatpush1.msra.mxu0 %v259
    %498 = vmatprep.subr.mxu0 0.0
    %499 = vmatpush1.msra.mxu0 %v260
    %500 = vmatprep.subr.mxu0 0.0
    %501 = vmatpush1.msra.mxu0 %v261
    %502 = vmatprep.subr.mxu0 0.0
    %503 = vmatpush1.msra.mxu0 %v262
    %504 = vmatprep.subr.mxu0 0.0
    %505 = vmatpush1.msra.mxu0 %v263
    %506 = vmatprep.subr.mxu0 0.0
    %507 = vmatpush1.msra.mxu0 %v264
    %508 = vmatprep.subr.mxu0 0.0
    %509 = vmatpush1.msra.mxu0 %v265
    %510 = vmatprep.subr.mxu0 0.0
    %511 = vmatpush1.msra.mxu0 %v266
    %512 = vmatprep.subr.mxu0 0.0
    %513 = vmatpush1.msra.mxu0 %v267
    %514 = vmatprep.subr.mxu0 0.0
    %515 = vmatpush1.msra.mxu0 0.0
    %516 = vmatprep.subr.mxu0 0.0
    %517 = vmatpush1.msra.mxu0 0.0
    %518 = vmatprep.subr.mxu0 0.0
    %519 = vmatpush1.msra.mxu0 0.0
    %520 = vmatprep.subr.mxu0 0.0
    %521 = vmatpush1.msra.mxu0 0.0
    %522 = vmatprep.subr.mxu0 0.0
    %523 = vmatpush1.msra.mxu0 0.0
    %524 = vmatprep.subr.mxu0 0.0
    %525 = vmatpush1.msra.mxu0 0.0
    %526 = vmatprep.subr.mxu0 0.0
    %527 = vmatpush1.msra.mxu0 0.0
    %528 = vmatprep.subr.mxu0 0.0
    %529 = vmatpush1.msra.mxu0 0.0
    %530 = vmatprep.subr.mxu0 0.0
    %531 = vmatpush1.msra.mxu0 0.0
    %532 = vmatprep.subr.mxu0 0.0
    %533 = vmatpush1.msra.mxu0 0.0
    %534 = vmatprep.subr.mxu0 0.0
    %535 = vmatpush1.msra.mxu0 0.0
    %536 = vmatprep.subr.mxu0 0.0
    %537 = vmatpush1.msra.mxu0 0.0
    %538 = vmatprep.subr.mxu0 0.0
    %539 = vmatpush1.msra.mxu0 0.0
    %540 = vmatprep.subr.mxu0 0.0
    %541 = vmatpush1.msra.mxu0 0.0
    %542 = vmatprep.subr.mxu0 0.0
    %543 = vmatpush1.msra.mxu0 0.0
    %544 = vmatprep.subr.mxu0 0.0
    %545 = vmatpush1.msra.mxu0 0.0
    %546 = vmatprep.mubr.f32.mxu0 0.0
    %547 = vmatmul.mubr.f32.gmra.mrb[0].mxu0 %v203
    %v548 = vpop.f32.mrb[0].mxu0
    %v549 = vadd.f32 0.0, %v548
    %v550 = vpop.f32.mrb[0].mxu0
    %551 = vdwg.mxu0
    %v552 = vsub.f32 %v481, %v549
    %553 = vst [vmem:[#allocation2] sm:$0xff] %v552
    %s554 = scalar_lea.vmem [#allocation2], 8
    %v555 = vld [vmem:[%s554] sm:$0xff]
    %556 = vmatprep.subr.mxu0 0.0
    %557 = vmatpush1.msra.mxu0 %v220
    %558 = vmatprep.subr.mxu0 0.0
    %559 = vmatpush1.msra.mxu0 %v221
    %560 = vmatprep.subr.mxu0 0.0
    %561 = vmatpush1.msra.mxu0 %v222
    %562 = vmatprep.subr.mxu0 0.0
    %563 = vmatpush1.msra.mxu0 %v223
    %564 = vmatprep.subr.mxu0 0.0
    %565 = vmatpush1.msra.mxu0 %v224
    %566 = vmatprep.subr.mxu0 0.0
    %567 = vmatpush1.msra.mxu0 %v225
    %568 = vmatprep.subr.mxu0 0.0
    %569 = vmatpush1.msra.mxu0 %v226
    %570 = vmatprep.subr.mxu0 0.0
    %571 = vmatpush1.msra.mxu0 %v227
    %572 = vmatprep.subr.mxu0 0.0
    %573 = vmatpush1.msra.mxu0 %v228
    %574 = vmatprep.subr.mxu0 0.0
    %575 = vmatpush1.msra.mxu0 %v229
    %576 = vmatprep.subr.mxu0 0.0
    %577 = vmatpush1.msra.mxu0 %v230
    %578 = vmatprep.subr.mxu0 0.0
    %579 = vmatpush1.msra.mxu0 %v231
    %580 = vmatprep.subr.mxu0 0.0
    %581 = vmatpush1.msra.mxu0 %v232
    %582 = vmatprep.subr.mxu0 0.0
    %583 = vmatpush1.msra.mxu0 %v233
    %584 = vmatprep.subr.mxu0 0.0
    %585 = vmatpush1.msra.mxu0 %v234
    %586 = vmatprep.subr.mxu0 0.0
    %587 = vmatpush1.msra.mxu0 %v235
    %588 = vmatprep.subr.mxu0 0.0
    %589 = vmatpush1.msra.mxu0 0.0
    %590 = vmatprep.subr.mxu0 0.0
    %591 = vmatpush1.msra.mxu0 0.0
    %592 = vmatprep.subr.mxu0 0.0
    %593 = vmatpush1.msra.mxu0 0.0
    %594 = vmatprep.subr.mxu0 0.0
    %595 = vmatpush1.msra.mxu0 0.0
    %596 = vmatprep.subr.mxu0 0.0
    %597 = vmatpush1.msra.mxu0 0.0
    %598 = vmatprep.subr.mxu0 0.0
    %599 = vmatpush1.msra.mxu0 0.0
    %600 = vmatprep.subr.mxu0 0.0
    %601 = vmatpush1.msra.mxu0 0.0
    %602 = vmatprep.subr.mxu0 0.0
    %603 = vmatpush1.msra.mxu0 0.0
    %604 = vmatprep.subr.mxu0 0.0
    %605 = vmatpush1.msra.mxu0 0.0
    %606 = vmatprep.subr.mxu0 0.0
    %607 = vmatpush1.msra.mxu0 0.0
    %608 = vmatprep.subr.mxu0 0.0
    %609 = vmatpush1.msra.mxu0 0.0
    %610 = vmatprep.subr.mxu0 0.0
    %611 = vmatpush1.msra.mxu0 0.0
    %612 = vmatprep.subr.mxu0 0.0
    %613 = vmatpush1.msra.mxu0 0.0
    %614 = vmatprep.subr.mxu0 0.0
    %615 = vmatpush1.msra.mxu0 0.0
    %616 = vmatprep.subr.mxu0 0.0
    %617 = vmatpush1.msra.mxu0 0.0
    %618 = vmatprep.subr.mxu0 0.0
    %619 = vmatpush1.msra.mxu0 0.0
    %620 = vmatprep.mubr.f32.mxu0 0.0
    %621 = vmatmul.mubr.f32.gmra.mrb[0].mxu0 %v200
    %v622 = vpop.f32.mrb[0].mxu0
    %v623 = vadd.f32 0.0, %v622
    %v624 = vpop.f32.mrb[0].mxu0
    %625 = vdwg.mxu0
    %v626 = vadd.f32 %v555, %v623
    %627 = vmatprep.subr.mxu0 0.0
    %628 = vmatpush1.msra.mxu0 %v204
    %629 = vmatprep.subr.mxu0 0.0
    %630 = vmatpush1.msra.mxu0 %v205
    %631 = vmatprep.subr.mxu0 0.0
    %632 = vmatpush1.msra.mxu0 %v206
    %633 = vmatprep.subr.mxu0 0.0
    %634 = vmatpush1.msra.mxu0 %v207
    %635 = vmatprep.subr.mxu0 0.0
    %636 = vmatpush1.msra.mxu0 %v208
    %637 = vmatprep.subr.mxu0 0.0
    %638 = vmatpush1.msra.mxu0 %v209
    %639 = vmatprep.subr.mxu0 0.0
    %640 = vmatpush1.msra.mxu0 %v210
    %641 = vmatprep.subr.mxu0 0.0
    %642 = vmatpush1.msra.mxu0 %v211
    %643 = vmatprep.subr.mxu0 0.0
    %644 = vmatpush1.msra.mxu0 %v212
    %645 = vmatprep.subr.mxu0 0.0
    %646 = vmatpush1.msra.mxu0 %v213
    %647 = vmatprep.subr.mxu0 0.0
    %648 = vmatpush1.msra.mxu0 %v214
    %649 = vmatprep.subr.mxu0 0.0
    %650 = vmatpush1.msra.mxu0 %v215
    %651 = vmatprep.subr.mxu0 0.0
    %652 = vmatpush1.msra.mxu0 %v216
    %653 = vmatprep.subr.mxu0 0.0
    %654 = vmatpush1.msra.mxu0 %v217
    %655 = vmatprep.subr.mxu0 0.0
    %656 = vmatpush1.msra.mxu0 %v218
    %657 = vmatprep.subr.mxu0 0.0
    %658 = vmatpush1.msra.mxu0 %v219
    %659 = vmatprep.subr.mxu0 0.0
    %660 = vmatpush1.msra.mxu0 0.0
    %661 = vmatprep.subr.mxu0 0.0
    %662 = vmatpush1.msra.mxu0 0.0
    %663 = vmatprep.subr.mxu0 0.0
    %664 = vmatpush1.msra.mxu0 0.0
    %665 = vmatprep.subr.mxu0 0.0
    %666 = vmatpush1.msra.mxu0 0.0
    %667 = vmatprep.subr.mxu0 0.0
    %668 = vmatpush1.msra.mxu0 0.0
    %669 = vmatprep.subr.mxu0 0.0
    %670 = vmatpush1.msra.mxu0 0.0
    %671 = vmatprep.subr.mxu0 0.0
    %672 = vmatpush1.msra.mxu0 0.0
    %673 = vmatprep.subr.mxu0 0.0
    %674 = vmatpush1.msra.mxu0 0.0
    %675 = vmatprep.subr.mxu0 0.0
    %676 = vmatpush1.msra.mxu0 0.0
    %677 = vmatprep.subr.mxu0 0.0
    %678 = vmatpush1.msra.mxu0 0.0
    %679 = vmatprep.subr.mxu0 0.0
    %680 = vmatpush1.msra.mxu0 0.0
    %681 = vmatprep.subr.mxu0 0.0
    %682 = vmatpush1.msra.mxu0 0.0
    %683 = vmatprep.subr.mxu0 0.0
    %684 = vmatpush1.msra.mxu0 0.0
    %685 = vmatprep.subr.mxu0 0.0
    %686 = vmatpush1.msra.mxu0 0.0
    %687 = vmatprep.subr.mxu0 0.0
    %688 = vmatpush1.msra.mxu0 0.0
    %689 = vmatprep.subr.mxu0 0.0
    %690 = vmatpush1.msra.mxu0 0.0
    %691 = vmatprep.mubr.f32.mxu0 0.0
    %692 = vmatmul.mubr.f32.gmra.mrb[0].mxu0 %v201
    %v693 = vpop.f32.mrb[0].mxu0
    %v694 = vadd.f32 0.0, %v693
    %v695 = vpop.f32.mrb[0].mxu0
    %696 = vdwg.mxu0
    %v697 = vadd.f32 %v626, %v694
    %698 = vmatprep.subr.mxu0 0.0
    %699 = vmatpush1.msra.mxu0 %v252
    %700 = vmatprep.subr.mxu0 0.0
    %701 = vmatpush1.msra.mxu0 %v253
    %702 = vmatprep.subr.mxu0 0.0
    %703 = vmatpush1.msra.mxu0 %v254
    %704 = vmatprep.subr.mxu0 0.0
    %705 = vmatpush1.msra.mxu0 %v255
    %706 = vmatprep.subr.mxu0 0.0
    %707 = vmatpush1.msra.mxu0 %v256
    %708 = vmatprep.subr.mxu0 0.0
    %709 = vmatpush1.msra.mxu0 %v257
    %710 = vmatprep.subr.mxu0 0.0
    %711 = vmatpush1.msra.mxu0 %v258
    %712 = vmatprep.subr.mxu0 0.0
    %713 = vmatpush1.msra.mxu0 %v259
    %714 = vmatprep.subr.mxu0 0.0
    %715 = vmatpush1.msra.mxu0 %v260
    %716 = vmatprep.subr.mxu0 0.0
    %717 = vmatpush1.msra.mxu0 %v261
    %718 = vmatprep.subr.mxu0 0.0
    %719 = vmatpush1.msra.mxu0 %v262
    %720 = vmatprep.subr.mxu0 0.0
    %721 = vmatpush1.msra.mxu0 %v263
    %722 = vmatprep.subr.mxu0 0.0
    %723 = vmatpush1.msra.mxu0 %v264
    %724 = vmatprep.subr.mxu0 0.0
    %725 = vmatpush1.msra.mxu0 %v265
    %726 = vmatprep.subr.mxu0 0.0
    %727 = vmatpush1.msra.mxu0 %v266
    %728 = vmatprep.subr.mxu0 0.0
    %729 = vmatpush1.msra.mxu0 %v267
    %730 = vmatprep.subr.mxu0 0.0
    %731 = vmatpush1.msra.mxu0 0.0
    %732 = vmatprep.subr.mxu0 0.0
    %733 = vmatpush1.msra.mxu0 0.0
    %734 = vmatprep.subr.mxu0 0.0
    %735 = vmatpush1.msra.mxu0 0.0
    %736 = vmatprep.subr.mxu0 0.0
    %737 = vmatpush1.msra.mxu0 0.0
    %738 = vmatprep.subr.mxu0 0.0
    %739 = vmatpush1.msra.mxu0 0.0
    %740 = vmatprep.subr.mxu0 0.0
    %741 = vmatpush1.msra.mxu0 0.0
    %742 = vmatprep.subr.mxu0 0.0
    %743 = vmatpush1.msra.mxu0 0.0
    %744 = vmatprep.subr.mxu0 0.0
    %745 = vmatpush1.msra.mxu0 0.0
    %746 = vmatprep.subr.mxu0 0.0
    %747 = vmatpush1.msra.mxu0 0.0
    %748 = vmatprep.subr.mxu0 0.0
    %749 = vmatpush1.msra.mxu0 0.0
    %750 = vmatprep.subr.mxu0 0.0
    %751 = vmatpush1.msra.mxu0 0.0
    %752 = vmatprep.subr.mxu0 0.0
    %753 = vmatpush1.msra.mxu0 0.0
    %754 = vmatprep.subr.mxu0 0.0
    %755 = vmatpush1.msra.mxu0 0.0
    %756 = vmatprep.subr.mxu0 0.0
    %757 = vmatpush1.msra.mxu0 0.0
    %758 = vmatprep.subr.mxu0 0.0
    %759 = vmatpush1.msra.mxu0 0.0
    %760 = vmatprep.subr.mxu0 0.0
    %761 = vmatpush1.msra.mxu0 0.0
    %762 = vmatprep.mubr.f32.mxu0 0.0
    %763 = vmatmul.mubr.f32.gmra.mrb[0].mxu0 %v202
    %v764 = vpop.f32.mrb[0].mxu0
    %v765 = vadd.f32 0.0, %v764
    %v766 = vpop.f32.mrb[0].mxu0
    %767 = vdwg.mxu0
    %v768 = vsub.f32 %v697, %v765
    %769 = vmatprep.subr.mxu0 0.0
    %770 = vmatpush1.msra.mxu0 %v236
    %771 = vmatprep.subr.mxu0 0.0
    %772 = vmatpush1.msra.mxu0 %v237
    %773 = vmatprep.subr.mxu0 0.0
    %774 = vmatpush1.msra.mxu0 %v238
    %775 = vmatprep.subr.mxu0 0.0
    %776 = vmatpush1.msra.mxu0 %v239
    %777 = vmatprep.subr.mxu0 0.0
    %778 = vmatpush1.msra.mxu0 %v240
    %779 = vmatprep.subr.mxu0 0.0
    %780 = vmatpush1.msra.mxu0 %v241
    %781 = vmatprep.subr.mxu0 0.0
    %782 = vmatpush1.msra.mxu0 %v242
    %783 = vmatprep.subr.mxu0 0.0
    %784 = vmatpush1.msra.mxu0 %v243
    %785 = vmatprep.subr.mxu0 0.0
    %786 = vmatpush1.msra.mxu0 %v244
    %787 = vmatprep.subr.mxu0 0.0
    %788 = vmatpush1.msra.mxu0 %v245
    %789 = vmatprep.subr.mxu0 0.0
    %790 = vmatpush1.msra.mxu0 %v246
    %791 = vmatprep.subr.mxu0 0.0
    %792 = vmatpush1.msra.mxu0 %v247
    %793 = vmatprep.subr.mxu0 0.0
    %794 = vmatpush1.msra.mxu0 %v248
    %795 = vmatprep.subr.mxu0 0.0
    %796 = vmatpush1.msra.mxu0 %v249
    %797 = vmatprep.subr.mxu0 0.0
    %798 = vmatpush1.msra.mxu0 %v250
    %799 = vmatprep.subr.mxu0 0.0
    %800 = vmatpush1.msra.mxu0 %v251
    %801 = vmatprep.subr.mxu0 0.0
    %802 = vmatpush1.msra.mxu0 0.0
    %803 = vmatprep.subr.mxu0 0.0
    %804 = vmatpush1.msra.mxu0 0.0
    %805 = vmatprep.subr.mxu0 0.0
    %806 = vmatpush1.msra.mxu0 0.0
    %807 = vmatprep.subr.mxu0 0.0
    %808 = vmatpush1.msra.mxu0 0.0
    %809 = vmatprep.subr.mxu0 0.0
    %810 = vmatpush1.msra.mxu0 0.0
    %811 = vmatprep.subr.mxu0 0.0
    %812 = vmatpush1.msra.mxu0 0.0
    %813 = vmatprep.subr.mxu0 0.0
    %814 = vmatpush1.msra.mxu0 0.0
    %815 = vmatprep.subr.mxu0 0.0
    %816 = vmatpush1.msra.mxu0 0.0
    %817 = vmatprep.subr.mxu0 0.0
    %818 = vmatpush1.msra.mxu0 0.0
    %819 = vmatprep.subr.mxu0 0.0
    %820 = vmatpush1.msra.mxu0 0.0
    %821 = vmatprep.subr.mxu0 0.0
    %822 = vmatpush1.msra.mxu0 0.0
    %823 = vmatprep.subr.mxu0 0.0
    %824 = vmatpush1.msra.mxu0 0.0
    %825 = vmatprep.subr.mxu0 0.0
    %826 = vmatpush1.msra.mxu0 0.0
    %827 = vmatprep.subr.mxu0 0.0
    %828 = vmatpush1.msra.mxu0 0.0
    %829 = vmatprep.subr.mxu0 0.0
    %830 = vmatpush1.msra.mxu0 0.0
    %831 = vmatprep.subr.mxu0 0.0
    %832 = vmatpush1.msra.mxu0 0.0
    %833 = vmatprep.mubr.f32.mxu0 0.0
    %834 = vmatmul.mubr.f32.gmra.mrb[0].mxu0 %v203
    %v835 = vpop.f32.mrb[0].mxu0
    %v836 = vadd.f32 0.0, %v835
    %v837 = vpop.f32.mrb[0].mxu0
    %838 = vdwg.mxu0
    %v839 = vadd.f32 %v768, %v836
    %840 = vst [vmem:[%s554] sm:$0xff] %v839
    %s841 = scalar_lea.vmem [#allocation2], 16
    %v842 = vld [vmem:[%s841] sm:$0xff]
    %843 = vmatprep.subr.mxu0 0.0
    %844 = vmatpush1.msra.mxu0 %v236
    %845 = vmatprep.subr.mxu0 0.0
    %846 = vmatpush1.msra.mxu0 %v237
    %847 = vmatprep.subr.mxu0 0.0
    %848 = vmatpush1.msra.mxu0 %v238
    %849 = vmatprep.subr.mxu0 0.0
    %850 = vmatpush1.msra.mxu0 %v239
    %851 = vmatprep.subr.mxu0 0.0
    %852 = vmatpush1.msra.mxu0 %v240
    %853 = vmatprep.subr.mxu0 0.0
    %854 = vmatpush1.msra.mxu0 %v241
    %855 = vmatprep.subr.mxu0 0.0
    %856 = vmatpush1.msra.mxu0 %v242
    %857 = vmatprep.subr.mxu0 0.0
    %858 = vmatpush1.msra.mxu0 %v243
    %859 = vmatprep.subr.mxu0 0.0
    %860 = vmatpush1.msra.mxu0 %v244
    %861 = vmatprep.subr.mxu0 0.0
    %862 = vmatpush1.msra.mxu0 %v245
    %863 = vmatprep.subr.mxu0 0.0
    %864 = vmatpush1.msra.mxu0 %v246
    %865 = vmatprep.subr.mxu0 0.0
    %866 = vmatpush1.msra.mxu0 %v247
    %867 = vmatprep.subr.mxu0 0.0
    %868 = vmatpush1.msra.mxu0 %v248
    %869 = vmatprep.subr.mxu0 0.0
    %870 = vmatpush1.msra.mxu0 %v249
    %871 = vmatprep.subr.mxu0 0.0
    %872 = vmatpush1.msra.mxu0 %v250
    %873 = vmatprep.subr.mxu0 0.0
    %874 = vmatpush1.msra.mxu0 %v251
    %875 = vmatprep.subr.mxu0 0.0
    %876 = vmatpush1.msra.mxu0 0.0
    %877 = vmatprep.subr.mxu0 0.0
    %878 = vmatpush1.msra.mxu0 0.0
    %879 = vmatprep.subr.mxu0 0.0
    %880 = vmatpush1.msra.mxu0 0.0
    %881 = vmatprep.subr.mxu0 0.0
    %882 = vmatpush1.msra.mxu0 0.0
    %883 = vmatprep.subr.mxu0 0.0
    %884 = vmatpush1.msra.mxu0 0.0
    %885 = vmatprep.subr.mxu0 0.0
    %886 = vmatpush1.msra.mxu0 0.0
    %887 = vmatprep.subr.mxu0 0.0
    %888 = vmatpush1.msra.mxu0 0.0
    %889 = vmatprep.subr.mxu0 0.0
    %890 = vmatpush1.msra.mxu0 0.0
    %891 = vmatprep.subr.mxu0 0.0
    %892 = vmatpush1.msra.mxu0 0.0
    %893 = vmatprep.subr.mxu0 0.0
    %894 = vmatpush1.msra.mxu0 0.0
    %895 = vmatprep.subr.mxu0 0.0
    %896 = vmatpush1.msra.mxu0 0.0
    %897 = vmatprep.subr.mxu0 0.0
    %898 = vmatpush1.msra.mxu0 0.0
    %899 = vmatprep.subr.mxu0 0.0
    %900 = vmatpush1.msra.mxu0 0.0
    %901 = vmatprep.subr.mxu0 0.0
    %902 = vmatpush1.msra.mxu0 0.0
    %903 = vmatprep.subr.mxu0 0.0
    %904 = vmatpush1.msra.mxu0 0.0
    %905 = vmatprep.subr.mxu0 0.0
    %906 = vmatpush1.msra.mxu0 0.0
    %907 = vmatprep.mubr.f32.mxu0 0.0
    %908 = vmatmul.mubr.f32.gmra.mrb[0].mxu0 %v200
    %v909 = vpop.f32.mrb[0].mxu0
    %v910 = vadd.f32 0.0, %v909
    %v911 = vpop.f32.mrb[0].mxu0
    %912 = vdwg.mxu0
    %v913 = vadd.f32 %v842, %v910
    %914 = vmatprep.subr.mxu0 0.0
    %915 = vmatpush1.msra.mxu0 %v252
    %916 = vmatprep.subr.mxu0 0.0
    %917 = vmatpush1.msra.mxu0 %v253
    %918 = vmatprep.subr.mxu0 0.0
    %919 = vmatpush1.msra.mxu0 %v254
    %920 = vmatprep.subr.mxu0 0.0
    %921 = vmatpush1.msra.mxu0 %v255
    %922 = vmatprep.subr.mxu0 0.0
    %923 = vmatpush1.msra.mxu0 %v256
    %924 = vmatprep.subr.mxu0 0.0
    %925 = vmatpush1.msra.mxu0 %v257
    %926 = vmatprep.subr.mxu0 0.0
    %927 = vmatpush1.msra.mxu0 %v258
    %928 = vmatprep.subr.mxu0 0.0
    %929 = vmatpush1.msra.mxu0 %v259
    %930 = vmatprep.subr.mxu0 0.0
    %931 = vmatpush1.msra.mxu0 %v260
    %932 = vmatprep.subr.mxu0 0.0
    %933 = vmatpush1.msra.mxu0 %v261
    %934 = vmatprep.subr.mxu0 0.0
    %935 = vmatpush1.msra.mxu0 %v262
    %936 = vmatprep.subr.mxu0 0.0
    %937 = vmatpush1.msra.mxu0 %v263
    %938 = vmatprep.subr.mxu0 0.0
    %939 = vmatpush1.msra.mxu0 %v264
    %940 = vmatprep.subr.mxu0 0.0
    %941 = vmatpush1.msra.mxu0 %v265
    %942 = vmatprep.subr.mxu0 0.0
    %943 = vmatpush1.msra.mxu0 %v266
    %944 = vmatprep.subr.mxu0 0.0
    %945 = vmatpush1.msra.mxu0 %v267
    %946 = vmatprep.subr.mxu0 0.0
    %947 = vmatpush1.msra.mxu0 0.0
    %948 = vmatprep.subr.mxu0 0.0
    %949 = vmatpush1.msra.mxu0 0.0
    %950 = vmatprep.subr.mxu0 0.0
    %951 = vmatpush1.msra.mxu0 0.0
    %952 = vmatprep.subr.mxu0 0.0
    %953 = vmatpush1.msra.mxu0 0.0
    %954 = vmatprep.subr.mxu0 0.0
    %955 = vmatpush1.msra.mxu0 0.0
    %956 = vmatprep.subr.mxu0 0.0
    %957 = vmatpush1.msra.mxu0 0.0
    %958 = vmatprep.subr.mxu0 0.0
    %959 = vmatpush1.msra.mxu0 0.0
    %960 = vmatprep.subr.mxu0 0.0
    %961 = vmatpush1.msra.mxu0 0.0
    %962 = vmatprep.subr.mxu0 0.0
    %963 = vmatpush1.msra.mxu0 0.0
    %964 = vmatprep.subr.mxu0 0.0
    %965 = vmatpush1.msra.mxu0 0.0
    %966 = vmatprep.subr.mxu0 0.0
    %967 = vmatpush1.msra.mxu0 0.0
    %968 = vmatprep.subr.mxu0 0.0
    %969 = vmatpush1.msra.mxu0 0.0
    %970 = vmatprep.subr.mxu0 0.0
    %971 = vmatpush1.msra.mxu0 0.0
    %972 = vmatprep.subr.mxu0 0.0
    %973 = vmatpush1.msra.mxu0 0.0
    %974 = vmatprep.subr.mxu0 0.0
    %975 = vmatpush1.msra.mxu0 0.0
    %976 = vmatprep.subr.mxu0 0.0
    %977 = vmatpush1.msra.mxu0 0.0
    %978 = vmatprep.mubr.f32.mxu0 0.0
    %979 = vmatmul.mubr.f32.gmra.mrb[0].mxu0 %v201
    %v980 = vpop.f32.mrb[0].mxu0
    %v981 = vadd.f32 0.0, %v980
    %v982 = vpop.f32.mrb[0].mxu0
    %983 = vdwg.mxu0
    %v984 = vadd.f32 %v913, %v981
    %985 = vmatprep.subr.mxu0 0.0
    %986 = vmatpush1.msra.mxu0 %v204
    %987 = vmatprep.subr.mxu0 0.0
    %988 = vmatpush1.msra.mxu0 %v205
    %989 = vmatprep.subr.mxu0 0.0
    %990 = vmatpush1.msra.mxu0 %v206
    %991 = vmatprep.subr.mxu0 0.0
    %992 = vmatpush1.msra.mxu0 %v207
    %993 = vmatprep.subr.mxu0 0.0
    %994 = vmatpush1.msra.mxu0 %v208
    %995 = vmatprep.subr.mxu0 0.0
    %996 = vmatpush1.msra.mxu0 %v209
    %997 = vmatprep.subr.mxu0 0.0
    %998 = vmatpush1.msra.mxu0 %v210
    %999 = vmatprep.subr.mxu0 0.0
    %1000 = vmatpush1.msra.mxu0 %v211
    %1001 = vmatprep.subr.mxu0 0.0
    %1002 = vmatpush1.msra.mxu0 %v212
    %1003 = vmatprep.subr.mxu0 0.0
    %1004 = vmatpush1.msra.mxu0 %v213
    %1005 = vmatprep.subr.mxu0 0.0
    %1006 = vmatpush1.msra.mxu0 %v214
    %1007 = vmatprep.subr.mxu0 0.0
    %1008 = vmatpush1.msra.mxu0 %v215
    %1009 = vmatprep.subr.mxu0 0.0
    %1010 = vmatpush1.msra.mxu0 %v216
    %1011 = vmatprep.subr.mxu0 0.0
    %1012 = vmatpush1.msra.mxu0 %v217
    %1013 = vmatprep.subr.mxu0 0.0
    %1014 = vmatpush1.msra.mxu0 %v218
    %1015 = vmatprep.subr.mxu0 0.0
    %1016 = vmatpush1.msra.mxu0 %v219
    %1017 = vmatprep.subr.mxu0 0.0
    %1018 = vmatpush1.msra.mxu0 0.0
    %1019 = vmatprep.subr.mxu0 0.0
    %1020 = vmatpush1.msra.mxu0 0.0
    %1021 = vmatprep.subr.mxu0 0.0
    %1022 = vmatpush1.msra.mxu0 0.0
    %1023 = vmatprep.subr.mxu0 0.0
    %1024 = vmatpush1.msra.mxu0 0.0
    %1025 = vmatprep.subr.mxu0 0.0
    %1026 = vmatpush1.msra.mxu0 0.0
    %1027 = vmatprep.subr.mxu0 0.0
    %1028 = vmatpush1.msra.mxu0 0.0
    %1029 = vmatprep.subr.mxu0 0.0
    %1030 = vmatpush1.msra.mxu0 0.0
    %1031 = vmatprep.subr.mxu0 0.0
    %1032 = vmatpush1.msra.mxu0 0.0
    %1033 = vmatprep.subr.mxu0 0.0
    %1034 = vmatpush1.msra.mxu0 0.0
    %1035 = vmatprep.subr.mxu0 0.0
    %1036 = vmatpush1.msra.mxu0 0.0
    %1037 = vmatprep.subr.mxu0 0.0
    %1038 = vmatpush1.msra.mxu0 0.0
    %1039 = vmatprep.subr.mxu0 0.0
    %1040 = vmatpush1.msra.mxu0 0.0
    %1041 = vmatprep.subr.mxu0 0.0
    %1042 = vmatpush1.msra.mxu0 0.0
    %1043 = vmatprep.subr.mxu0 0.0
    %1044 = vmatpush1.msra.mxu0 0.0
    %1045 = vmatprep.subr.mxu0 0.0
    %1046 = vmatpush1.msra.mxu0 0.0
    %1047 = vmatprep.subr.mxu0 0.0
    %1048 = vmatpush1.msra.mxu0 0.0
    %1049 = vmatprep.mubr.f32.mxu0 0.0
    %1050 = vmatmul.mubr.f32.gmra.mrb[0].mxu0 %v202
    %v1051 = vpop.f32.mrb[0].mxu0
    %v1052 = vadd.f32 0.0, %v1051
    %v1053 = vpop.f32.mrb[0].mxu0
    %1054 = vdwg.mxu0
    %v1055 = vadd.f32 %v984, %v1052
    %1056 = vmatprep.subr.mxu0 0.0
    %1057 = vmatpush1.msra.mxu0 %v220
    %1058 = vmatprep.subr.mxu0 0.0
    %1059 = vmatpush1.msra.mxu0 %v221
    %1060 = vmatprep.subr.mxu0 0.0
    %1061 = vmatpush1.msra.mxu0 %v222
    %1062 = vmatprep.subr.mxu0 0.0
    %1063 = vmatpush1.msra.mxu0 %v223
    %1064 = vmatprep.subr.mxu0 0.0
    %1065 = vmatpush1.msra.mxu0 %v224
    %1066 = vmatprep.subr.mxu0 0.0
    %1067 = vmatpush1.msra.mxu0 %v225
    %1068 = vmatprep.subr.mxu0 0.0
    %1069 = vmatpush1.msra.mxu0 %v226
    %1070 = vmatprep.subr.mxu0 0.0
    %1071 = vmatpush1.msra.mxu0 %v227
    %1072 = vmatprep.subr.mxu0 0.0
    %1073 = vmatpush1.msra.mxu0 %v228
    %1074 = vmatprep.subr.mxu0 0.0
    %1075 = vmatpush1.msra.mxu0 %v229
    %1076 = vmatprep.subr.mxu0 0.0
    %1077 = vmatpush1.msra.mxu0 %v230
    %1078 = vmatprep.subr.mxu0 0.0
    %1079 = vmatpush1.msra.mxu0 %v231
    %1080 = vmatprep.subr.mxu0 0.0
    %1081 = vmatpush1.msra.mxu0 %v232
    %1082 = vmatprep.subr.mxu0 0.0
    %1083 = vmatpush1.msra.mxu0 %v233
    %1084 = vmatprep.subr.mxu0 0.0
    %1085 = vmatpush1.msra.mxu0 %v234
    %1086 = vmatprep.subr.mxu0 0.0
    %1087 = vmatpush1.msra.mxu0 %v235
    %1088 = vmatprep.subr.mxu0 0.0
    %1089 = vmatpush1.msra.mxu0 0.0
    %1090 = vmatprep.subr.mxu0 0.0
    %1091 = vmatpush1.msra.mxu0 0.0
    %1092 = vmatprep.subr.mxu0 0.0
    %1093 = vmatpush1.msra.mxu0 0.0
    %1094 = vmatprep.subr.mxu0 0.0
    %1095 = vmatpush1.msra.mxu0 0.0
    %1096 = vmatprep.subr.mxu0 0.0
    %1097 = vmatpush1.msra.mxu0 0.0
    %1098 = vmatprep.subr.mxu0 0.0
    %1099 = vmatpush1.msra.mxu0 0.0
    %1100 = vmatprep.subr.mxu0 0.0
    %1101 = vmatpush1.msra.mxu0 0.0
    %1102 = vmatprep.subr.mxu0 0.0
    %1103 = vmatpush1.msra.mxu0 0.0
    %1104 = vmatprep.subr.mxu0 0.0
    %1105 = vmatpush1.msra.mxu0 0.0
    %1106 = vmatprep.subr.mxu0 0.0
    %1107 = vmatpush1.msra.mxu0 0.0
    %1108 = vmatprep.subr.mxu0 0.0
    %1109 = vmatpush1.msra.mxu0 0.0
    %1110 = vmatprep.subr.mxu0 0.0
    %1111 = vmatpush1.msra.mxu0 0.0
    %1112 = vmatprep.subr.mxu0 0.0
    %1113 = vmatpush1.msra.mxu0 0.0
    %1114 = vmatprep.subr.mxu0 0.0
    %1115 = vmatpush1.msra.mxu0 0.0
    %1116 = vmatprep.subr.mxu0 0.0
    %1117 = vmatpush1.msra.mxu0 0.0
    %1118 = vmatprep.subr.mxu0 0.0
    %1119 = vmatpush1.msra.mxu0 0.0
    %1120 = vmatprep.mubr.f32.mxu0 0.0
    %1121 = vmatmul.mubr.f32.gmra.mrb[0].mxu0 %v203
    %v1122 = vpop.f32.mrb[0].mxu0
    %v1123 = vadd.f32 0.0, %v1122
    %v1124 = vpop.f32.mrb[0].mxu0
    %1125 = vdwg.mxu0
    %v1126 = vsub.f32 %v1055, %v1123
    %1127 = vst [vmem:[%s841] sm:$0xff] %v1126
    %s1128 = scalar_lea.vmem [#allocation2], 24
    %v1129 = vld [vmem:[%s1128] sm:$0xff]
    %1130 = vmatprep.subr.mxu0 0.0
    %1131 = vmatpush1.msra.mxu0 %v252
    %1132 = vmatprep.subr.mxu0 0.0
    %1133 = vmatpush1.msra.mxu0 %v253
    %1134 = vmatprep.subr.mxu0 0.0
    %1135 = vmatpush1.msra.mxu0 %v254
    %1136 = vmatprep.subr.mxu0 0.0
    %1137 = vmatpush1.msra.mxu0 %v255
    %1138 = vmatprep.subr.mxu0 0.0
    %1139 = vmatpush1.msra.mxu0 %v256
    %1140 = vmatprep.subr.mxu0 0.0
    %1141 = vmatpush1.msra.mxu0 %v257
    %1142 = vmatprep.subr.mxu0 0.0
    %1143 = vmatpush1.msra.mxu0 %v258
    %1144 = vmatprep.subr.mxu0 0.0
    %1145 = vmatpush1.msra.mxu0 %v259
    %1146 = vmatprep.subr.mxu0 0.0
    %1147 = vmatpush1.msra.mxu0 %v260
    %1148 = vmatprep.subr.mxu0 0.0
    %1149 = vmatpush1.msra.mxu0 %v261
    %1150 = vmatprep.subr.mxu0 0.0
    %1151 = vmatpush1.msra.mxu0 %v262
    %1152 = vmatprep.subr.mxu0 0.0
    %1153 = vmatpush1.msra.mxu0 %v263
    %1154 = vmatprep.subr.mxu0 0.0
    %1155 = vmatpush1.msra.mxu0 %v264
    %1156 = vmatprep.subr.mxu0 0.0
    %1157 = vmatpush1.msra.mxu0 %v265
    %1158 = vmatprep.subr.mxu0 0.0
    %1159 = vmatpush1.msra.mxu0 %v266
    %1160 = vmatprep.subr.mxu0 0.0
    %1161 = vmatpush1.msra.mxu0 %v267
    %1162 = vmatprep.subr.mxu0 0.0
    %1163 = vmatpush1.msra.mxu0 0.0
    %1164 = vmatprep.subr.mxu0 0.0
    %1165 = vmatpush1.msra.mxu0 0.0
    %1166 = vmatprep.subr.mxu0 0.0
    %1167 = vmatpush1.msra.mxu0 0.0
    %1168 = vmatprep.subr.mxu0 0.0
    %1169 = vmatpush1.msra.mxu0 0.0
    %1170 = vmatprep.subr.mxu0 0.0
    %1171 = vmatpush1.msra.mxu0 0.0
    %1172 = vmatprep.subr.mxu0 0.0
    %1173 = vmatpush1.msra.mxu0 0.0
    %1174 = vmatprep.subr.mxu0 0.0
    %1175 = vmatpush1.msra.mxu0 0.0
    %1176 = vmatprep.subr.mxu0 0.0
    %1177 = vmatpush1.msra.mxu0 0.0
    %1178 = vmatprep.subr.mxu0 0.0
    %1179 = vmatpush1.msra.mxu0 0.0
    %1180 = vmatprep.subr.mxu0 0.0
    %1181 = vmatpush1.msra.mxu0 0.0
    %1182 = vmatprep.subr.mxu0 0.0
    %1183 = vmatpush1.msra.mxu0 0.0
    %1184 = vmatprep.subr.mxu0 0.0
    %1185 = vmatpush1.msra.mxu0 0.0
    %1186 = vmatprep.subr.mxu0 0.0
    %1187 = vmatpush1.msra.mxu0 0.0
    %1188 = vmatprep.subr.mxu0 0.0
    %1189 = vmatpush1.msra.mxu0 0.0
    %1190 = vmatprep.subr.mxu0 0.0
    %1191 = vmatpush1.msra.mxu0 0.0
    %1192 = vmatprep.subr.mxu0 0.0
    %1193 = vmatpush1.msra.mxu0 0.0
    %1194 = vmatprep.mubr.f32.mxu0 0.0
    %1195 = vmatmul.mubr.f32.gmra.mrb[0].mxu0 %v200
    %v1196 = vpop.f32.mrb[0].mxu0
    %v1197 = vadd.f32 0.0, %v1196
    %v1198 = vpop.f32.mrb[0].mxu0
    %1199 = vdwg.mxu0
    %v1200 = vadd.f32 %v1129, %v1197
    %1201 = vmatprep.subr.mxu0 0.0
    %1202 = vmatpush1.msra.mxu0 %v236
    %1203 = vmatprep.subr.mxu0 0.0
    %1204 = vmatpush1.msra.mxu0 %v237
    %1205 = vmatprep.subr.mxu0 0.0
    %1206 = vmatpush1.msra.mxu0 %v238
    %1207 = vmatprep.subr.mxu0 0.0
    %1208 = vmatpush1.msra.mxu0 %v239
    %1209 = vmatprep.subr.mxu0 0.0
    %1210 = vmatpush1.msra.mxu0 %v240
    %1211 = vmatprep.subr.mxu0 0.0
    %1212 = vmatpush1.msra.mxu0 %v241
    %1213 = vmatprep.subr.mxu0 0.0
    %1214 = vmatpush1.msra.mxu0 %v242
    %1215 = vmatprep.subr.mxu0 0.0
    %1216 = vmatpush1.msra.mxu0 %v243
    %1217 = vmatprep.subr.mxu0 0.0
    %1218 = vmatpush1.msra.mxu0 %v244
    %1219 = vmatprep.subr.mxu0 0.0
    %1220 = vmatpush1.msra.mxu0 %v245
    %1221 = vmatprep.subr.mxu0 0.0
    %1222 = vmatpush1.msra.mxu0 %v246
    %1223 = vmatprep.subr.mxu0 0.0
    %1224 = vmatpush1.msra.mxu0 %v247
    %1225 = vmatprep.subr.mxu0 0.0
    %1226 = vmatpush1.msra.mxu0 %v248
    %1227 = vmatprep.subr.mxu0 0.0
    %1228 = vmatpush1.msra.mxu0 %v249
    %1229 = vmatprep.subr.mxu0 0.0
    %1230 = vmatpush1.msra.mxu0 %v250
    %1231 = vmatprep.subr.mxu0 0.0
    %1232 = vmatpush1.msra.mxu0 %v251
    %1233 = vmatprep.subr.mxu0 0.0
    %1234 = vmatpush1.msra.mxu0 0.0
    %1235 = vmatprep.subr.mxu0 0.0
    %1236 = vmatpush1.msra.mxu0 0.0
    %1237 = vmatprep.subr.mxu0 0.0
    %1238 = vmatpush1.msra.mxu0 0.0
    %1239 = vmatprep.subr.mxu0 0.0
    %1240 = vmatpush1.msra.mxu0 0.0
    %1241 = vmatprep.subr.mxu0 0.0
    %1242 = vmatpush1.msra.mxu0 0.0
    %1243 = vmatprep.subr.mxu0 0.0
    %1244 = vmatpush1.msra.mxu0 0.0
    %1245 = vmatprep.subr.mxu0 0.0
    %1246 = vmatpush1.msra.mxu0 0.0
    %1247 = vmatprep.subr.mxu0 0.0
    %1248 = vmatpush1.msra.mxu0 0.0
    %1249 = vmatprep.subr.mxu0 0.0
    %1250 = vmatpush1.msra.mxu0 0.0
    %1251 = vmatprep.subr.mxu0 0.0
    %1252 = vmatpush1.msra.mxu0 0.0
    %1253 = vmatprep.subr.mxu0 0.0
    %1254 = vmatpush1.msra.mxu0 0.0
    %1255 = vmatprep.subr.mxu0 0.0
    %1256 = vmatpush1.msra.mxu0 0.0
    %1257 = vmatprep.subr.mxu0 0.0
    %1258 = vmatpush1.msra.mxu0 0.0
    %1259 = vmatprep.subr.mxu0 0.0
    %1260 = vmatpush1.msra.mxu0 0.0
    %1261 = vmatprep.subr.mxu0 0.0
    %1262 = vmatpush1.msra.mxu0 0.0
    %1263 = vmatprep.subr.mxu0 0.0
    %1264 = vmatpush1.msra.mxu0 0.0
    %1265 = vmatprep.mubr.f32.mxu0 0.0
    %1266 = vmatmul.mubr.f32.gmra.mrb[0].mxu0 %v201
    %v1267 = vpop.f32.mrb[0].mxu0
    %v1268 = vadd.f32 0.0, %v1267
    %v1269 = vpop.f32.mrb[0].mxu0
    %1270 = vdwg.mxu0
    %v1271 = vsub.f32 %v1200, %v1268
    %1272 = vmatprep.subr.mxu0 0.0
    %1273 = vmatpush1.msra.mxu0 %v220
    %1274 = vmatprep.subr.mxu0 0.0
    %1275 = vmatpush1.msra.mxu0 %v221
    %1276 = vmatprep.subr.mxu0 0.0
    %1277 = vmatpush1.msra.mxu0 %v222
    %1278 = vmatprep.subr.mxu0 0.0
    %1279 = vmatpush1.msra.mxu0 %v223
    %1280 = vmatprep.subr.mxu0 0.0
    %1281 = vmatpush1.msra.mxu0 %v224
    %1282 = vmatprep.subr.mxu0 0.0
    %1283 = vmatpush1.msra.mxu0 %v225
    %1284 = vmatprep.subr.mxu0 0.0
    %1285 = vmatpush1.msra.mxu0 %v226
    %1286 = vmatprep.subr.mxu0 0.0
    %1287 = vmatpush1.msra.mxu0 %v227
    %1288 = vmatprep.subr.mxu0 0.0
    %1289 = vmatpush1.msra.mxu0 %v228
    %1290 = vmatprep.subr.mxu0 0.0
    %1291 = vmatpush1.msra.mxu0 %v229
    %1292 = vmatprep.subr.mxu0 0.0
    %1293 = vmatpush1.msra.mxu0 %v230
    %1294 = vmatprep.subr.mxu0 0.0
    %1295 = vmatpush1.msra.mxu0 %v231
    %1296 = vmatprep.subr.mxu0 0.0
    %1297 = vmatpush1.msra.mxu0 %v232
    %1298 = vmatprep.subr.mxu0 0.0
    %1299 = vmatpush1.msra.mxu0 %v233
    %1300 = vmatprep.subr.mxu0 0.0
    %1301 = vmatpush1.msra.mxu0 %v234
    %1302 = vmatprep.subr.mxu0 0.0
    %1303 = vmatpush1.msra.mxu0 %v235
    %1304 = vmatprep.subr.mxu0 0.0
    %1305 = vmatpush1.msra.mxu0 0.0
    %1306 = vmatprep.subr.mxu0 0.0
    %1307 = vmatpush1.msra.mxu0 0.0
    %1308 = vmatprep.subr.mxu0 0.0
    %1309 = vmatpush1.msra.mxu0 0.0
    %1310 = vmatprep.subr.mxu0 0.0
    %1311 = vmatpush1.msra.mxu0 0.0
    %1312 = vmatprep.subr.mxu0 0.0
    %1313 = vmatpush1.msra.mxu0 0.0
    %1314 = vmatprep.subr.mxu0 0.0
    %1315 = vmatpush1.msra.mxu0 0.0
    %1316 = vmatprep.subr.mxu0 0.0
    %1317 = vmatpush1.msra.mxu0 0.0
    %1318 = vmatprep.subr.mxu0 0.0
    %1319 = vmatpush1.msra.mxu0 0.0
    %1320 = vmatprep.subr.mxu0 0.0
    %1321 = vmatpush1.msra.mxu0 0.0
    %1322 = vmatprep.subr.mxu0 0.0
    %1323 = vmatpush1.msra.mxu0 0.0
    %1324 = vmatprep.subr.mxu0 0.0
    %1325 = vmatpush1.msra.mxu0 0.0
    %1326 = vmatprep.subr.mxu0 0.0
    %1327 = vmatpush1.msra.mxu0 0.0
    %1328 = vmatprep.subr.mxu0 0.0
    %1329 = vmatpush1.msra.mxu0 0.0
    %1330 = vmatprep.subr.mxu0 0.0
    %1331 = vmatpush1.msra.mxu0 0.0
    %1332 = vmatprep.subr.mxu0 0.0
    %1333 = vmatpush1.msra.mxu0 0.0
    %1334 = vmatprep.subr.mxu0 0.0
    %1335 = vmatpush1.msra.mxu0 0.0
    %1336 = vmatprep.mubr.f32.mxu0 0.0
    %1337 = vmatmul.mubr.f32.gmra.mrb[0].mxu0 %v202
    %v1338 = vpop.f32.mrb[0].mxu0
    %v1339 = vadd.f32 0.0, %v1338
    %v1340 = vpop.f32.mrb[0].mxu0
    %1341 = vdwg.mxu0
    %v1342 = vadd.f32 %v1271, %v1339
    %1343 = vmatprep.subr.mxu0 0.0
    %1344 = vmatpush1.msra.mxu0 %v204
    %1345 = vmatprep.subr.mxu0 0.0
    %1346 = vmatpush1.msra.mxu0 %v205
    %1347 = vmatprep.subr.mxu0 0.0
    %1348 = vmatpush1.msra.mxu0 %v206
    %1349 = vmatprep.subr.mxu0 0.0
    %1350 = vmatpush1.msra.mxu0 %v207
    %1351 = vmatprep.subr.mxu0 0.0
    %1352 = vmatpush1.msra.mxu0 %v208
    %1353 = vmatprep.subr.mxu0 0.0
    %1354 = vmatpush1.msra.mxu0 %v209
    %1355 = vmatprep.subr.mxu0 0.0
    %1356 = vmatpush1.msra.mxu0 %v210
    %1357 = vmatprep.subr.mxu0 0.0
    %1358 = vmatpush1.msra.mxu0 %v211
    %1359 = vmatprep.subr.mxu0 0.0
    %1360 = vmatpush1.msra.mxu0 %v212
    %1361 = vmatprep.subr.mxu0 0.0
    %1362 = vmatpush1.msra.mxu0 %v213
    %1363 = vmatprep.subr.mxu0 0.0
    %1364 = vmatpush1.msra.mxu0 %v214
    %1365 = vmatprep.subr.mxu0 0.0
    %1366 = vmatpush1.msra.mxu0 %v215
    %1367 = vmatprep.subr.mxu0 0.0
    %1368 = vmatpush1.msra.mxu0 %v216
    %1369 = vmatprep.subr.mxu0 0.0
    %1370 = vmatpush1.msra.mxu0 %v217
    %1371 = vmatprep.subr.mxu0 0.0
    %1372 = vmatpush1.msra.mxu0 %v218
    %1373 = vmatprep.subr.mxu0 0.0
    %1374 = vmatpush1.msra.mxu0 %v219
    %1375 = vmatprep.subr.mxu0 0.0
    %1376 = vmatpush1.msra.mxu0 0.0
    %1377 = vmatprep.subr.mxu0 0.0
    %1378 = vmatpush1.msra.mxu0 0.0
    %1379 = vmatprep.subr.mxu0 0.0
    %1380 = vmatpush1.msra.mxu0 0.0
    %1381 = vmatprep.subr.mxu0 0.0
    %1382 = vmatpush1.msra.mxu0 0.0
    %1383 = vmatprep.subr.mxu0 0.0
    %1384 = vmatpush1.msra.mxu0 0.0
    %1385 = vmatprep.subr.mxu0 0.0
    %1386 = vmatpush1.msra.mxu0 0.0
    %1387 = vmatprep.subr.mxu0 0.0
    %1388 = vmatpush1.msra.mxu0 0.0
    %1389 = vmatprep.subr.mxu0 0.0
    %1390 = vmatpush1.msra.mxu0 0.0
    %1391 = vmatprep.subr.mxu0 0.0
    %1392 = vmatpush1.msra.mxu0 0.0
    %1393 = vmatprep.subr.mxu0 0.0
    %1394 = vmatpush1.msra.mxu0 0.0
    %1395 = vmatprep.subr.mxu0 0.0
    %1396 = vmatpush1.msra.mxu0 0.0
    %1397 = vmatprep.subr.mxu0 0.0
    %1398 = vmatpush1.msra.mxu0 0.0
    %1399 = vmatprep.subr.mxu0 0.0
    %1400 = vmatpush1.msra.mxu0 0.0
    %1401 = vmatprep.subr.mxu0 0.0
    %1402 = vmatpush1.msra.mxu0 0.0
    %1403 = vmatprep.subr.mxu0 0.0
    %1404 = vmatpush1.msra.mxu0 0.0
    %1405 = vmatprep.subr.mxu0 0.0
    %1406 = vmatpush1.msra.mxu0 0.0
    %1407 = vmatprep.mubr.f32.mxu0 0.0
    %1408 = vmatmul.mubr.f32.gmra.mrb[0].mxu0 %v203
    %v1409 = vpop.f32.mrb[0].mxu0
    %v1410 = vadd.f32 0.0, %v1409
    %v1411 = vpop.f32.mrb[0].mxu0
    %1412 = vdwg.mxu0
    %v1413 = vadd.f32 %v1342, %v1410
    %1414 = vst [vmem:[%s1128] sm:$0xff] %v1413
    // Predicated region
    $region74: #{tpu_custom_call.1} parent=1 // pred_check
      %p1415 = pneg %p146
    $region75: #{tpu_custom_call.1} parent=1 // pred_check_branch
      %1417 = sbr.rel (%p1415) target = $region77
    $region76: #{tpu_custom_call.1} parent=1 // pred_region
      %v1418 = vld [vmem:[#allocation2] sm:$0xff]
      %v1419 = vld [vmem:[#allocation2 + $0x8] sm:$0xff]
      %v1420 = vld [vmem:[#allocation2 + $0x10] sm:$0xff]
      %v1421 = vld [vmem:[#allocation2 + $0x18] sm:$0xff]
      %1422 = vst [vmem:[#allocation17] sm:$0xff] %v1418
      %1423 = vst [vmem:[#allocation17 + $0x8] sm:$0xff] %v1419
      %1424 = vst [vmem:[#allocation17 + $0x10] sm:$0xff] %v1420
      %1425 = vst [vmem:[#allocation17 + $0x18] sm:$0xff] %v1421
    $region77: #{tpu_custom_call.1} parent=1 // pred_fallthru
      _
    // Predicated region
    $region78: #{tpu_custom_call.1} parent=1 // pred_check
      _
    $region79: #{tpu_custom_call.1} parent=1 // pred_check_branch
      %1427 = sbr.rel (0) target = $region81
    $region80: #{tpu_custom_call.1} parent=1 // pred_region
      %s1429 = ssub.s32 512, 512
      %1430 = vsyncadd [#allocation5], %s1429
      %s1431 = sshll.u32 [#allocation17], 4
      %s1432 = int_to_ptr.vmem [resolvable:$true] %s1431
      %1437 = dma.vmem_to_hbm [thread:$0]  %s1432, 512, %s9, [#allocation5], 128, 128, 8
    $region81: #{tpu_custom_call.1} parent=1 // pred_fallthru
      _
    // Predicated region
    $region82: #{tpu_custom_call.1} parent=1 // pred_check
      _
    $region83: #{tpu_custom_call.1} parent=1 // pred_check_branch
      %1439 = sbr.rel (0) target = $region85
    $region84: #{tpu_custom_call.1} parent=1 // pred_region
      %1440 = dma.done [#allocation5], 512
    $region85: #{tpu_custom_call.1} parent=1 // pred_fallthru
      _
    %1441 = vsyncpa [#allocation4], 1
    %1442 = vsyncpa [#allocation7], 1
    %1443 = vsyncpa [#allocation10], 1
    %1444 = vsyncpa [#allocation13], 1
    %1445 = vsyncpa [#allocation16], 1
    %1446 = vsyncpa [#allocation5], 1

</llo_original>
